<compile_context>
chip_gen: v7x
topology: tpu7x:2x2x1
jax: 0.10.0
libtpu: 0.0.40
codegen_flags: <defaults>
</compile_context>

<pallas_src>
import functools

import jax
import jax.numpy as jnp
from jax.experimental import pallas as pl
from jax.experimental.pallas import tpu as pltpu

LN_EPS = 1e-5                      # torch.nn.LayerNorm default
_SQRT_HALF = 0.7071067811865476    # 1 / sqrt(2)


def _erf(x):
    # Abramowitz & Stegun 7.1.26 rational approximation, |error| <= 1.5e-7.
    a1, a2, a3, a4, a5 = (0.254829592, -0.284496736, 1.421413741,
                          -1.453152027, 1.061405429)
    p = 0.3275911
    ax = jnp.abs(x)
    t = 1.0 / (1.0 + p * ax)
    poly = ((((a5 * t + a4) * t + a3) * t + a2) * t + a1) * t
    y = 1.0 - poly * jnp.exp(-ax * ax)
    return jnp.where(x >= 0, y, -y)


def _gelu_exact(x):
    return 0.5 * x * (1.0 + _erf(x * _SQRT_HALF))


def _layernorm(x, g, b):
    mu = jnp.mean(x, axis=-1, keepdims=True)
    var = jnp.mean(jnp.square(x - mu), axis=-1, keepdims=True)
    return (x - mu) * jax.lax.rsqrt(var + LN_EPS) * g + b


# ----------------------- fused whole-model kernel -------------------------- #

def _fused_transformer_kernel(x_ref,
                              ln1_g_ref, ln1_b_ref,
                              wqkv_ref, bqkv_ref,
                              wo_ref, bo_ref,
                              ln2_g_ref, ln2_b_ref,
                              w1_ref, b1_ref,
                              w2_ref, b2_ref,
                              o_ref, resid_ref,
                              *, heads, dim_head):
    """One grid step = one (batch element, layer) pair.

    Grid: (B, depth).  The depth axis is 'arbitrary'; the residual stream for
    the current batch element persists in `resid_ref` (f32 VMEM scratch) across
    the depth steps.  Weight refs are that layer's slab (depth dim squeezed).
    """
    l = pl.program_id(1)
    cdt = jnp.bfloat16                       # MXU compute dtype
    inner = heads * dim_head
    scale = dim_head ** (-0.5)

    @pl.when(l == 0)
    def _():                                  # load this batch element's tokens
        resid_ref[...] = x_ref[...].astype(jnp.float32)

    x = resid_ref[...]                        # [N, D] f32 residual stream
    n_tok = x.shape[0]

    # ---------------- PreNorm -> Masked_Attention -> +residual ------------- #
    h = _layernorm(x, ln1_g_ref[...], ln1_b_ref[...])
    qkv = (jnp.dot(h.astype(cdt), wqkv_ref[...],
                   preferred_element_type=jnp.float32)
           + bqkv_ref[...])                   # [N, 3*inner] f32, lane-dense dot

    def split_heads(t):                       # [N, inner] -> [heads, N, dh]
        # 2-D minor transpose, sublane-aligned leading split, batched minor
        # swap: layout-friendly, no per-head lane slicing.
        return jnp.swapaxes(t.T.reshape(heads, dim_head, n_tok), -1, -2)

    q = split_heads(qkv[:, 0 * inner:1 * inner]) * scale   # fold scale into q
    k = split_heads(qkv[:, 1 * inner:2 * inner])
    v = split_heads(qkv[:, 2 * inner:3 * inner])

    # Batched scores: contract shared last axis directly (no explicit k^T).
    s = jnp.einsum('hqd,hkd->hqk', q.astype(cdt), k.astype(cdt),
                   preferred_element_type=jnp.float32)      # [heads, N, N]
    m = jnp.max(s, axis=-1, keepdims=True)
    p = jnp.exp(s - m)
    denom = jnp.sum(p, axis=-1, keepdims=True)
    # approx reciprocal ~1e-3 rel err; switch to exact division for strict
    # parity tests against torch softmax.
    p = p * pl.reciprocal(denom, approx=True)

    o_h = jnp.einsum('hqk,hkd->hqd', p.astype(cdt), v.astype(cdt),
                     preferred_element_type=jnp.float32)    # [heads, N, dh]

    # Fold the head merge into the out-projection: per-head [N,dh]x[dh,D]
    # batched matmul, then sum over heads -> lane-dense [N, D] (no concat).
    attn = (jnp.einsum('hnd,hdc->hnc', o_h.astype(cdt), wo_ref[...],
                       preferred_element_type=jnp.float32).sum(axis=0)
            + bo_ref[...])
    x = x + attn                              # to_out dropout = identity (eval)

    # ---------------- PreNorm -> Masked_FeedForward -> +residual ----------- #
    h = _layernorm(x, ln2_g_ref[...], ln2_b_ref[...])
    h1 = (jnp.dot(h.astype(cdt), w1_ref[...],
                  preferred_element_type=jnp.float32) + b1_ref[...])
    h1 = _gelu_exact(h1)                      # exact (erf) GELU, f32 on the VPU
    h2 = (jnp.dot(h1.astype(cdt), w2_ref[...],
                  preferred_element_type=jnp.float32) + b2_ref[...])
    x = x + h2

    resid_ref[...] = x                        # carry residual to next layer

    @pl.when(l == pl.num_programs(1) - 1)
    def _():                                  # finalize: write last layer out
        o_ref[...] = x.astype(o_ref.dtype)


def masked_transformer_forward(x, stacked, *, heads, dim_head):
    """Runs the whole Masked_Transformer in a single pallas_call."""
    B, N, D = x.shape
    depth = stacked["wqkv"].shape[0]

    kern = functools.partial(_fused_transformer_kernel,
                             heads=heads, dim_head=dim_head)

    weight_order = ("ln1_g", "ln1_b", "wqkv", "bqkv", "wo", "bo",
                    "ln2_g", "ln2_b", "w1", "b1", "w2", "b2")
    weights = tuple(stacked[k] for k in weight_order)

    def wspec(a):
        # Depth dim squeezed; index_map picks layer l's weight slab.
        zeros = (0,) * (a.ndim - 1)
        return pl.BlockSpec((None,) + tuple(a.shape[1:]),
                            lambda b, l, _z=zeros: (l,) + _z)

    tok_spec = pl.BlockSpec((None, N, D), lambda b, l: (b, 0, 0))

    return pl.pallas_call(
        kern,
        out_shape=jax.ShapeDtypeStruct((B, N, D), x.dtype),
        grid=(B, depth),                           # batch parallel, depth carry
        in_specs=[tok_spec] + [wspec(w) for w in weights],
        out_specs=tok_spec,
        scratch_shapes=[pltpu.VMEM((N, D), jnp.float32)],   # residual stream
        input_output_aliases={0: 0},               # update x in place
        compiler_params=pltpu.CompilerParams(
            dimension_semantics=("parallel", "arbitrary"),
            vmem_limit_bytes=32 * 1024 * 1024),
    )(x, *weights)


# ------------------------------ parameters --------------------------------- #

def init_params(key, dim, depth, heads, dim_head, mlp_dim):
    inner = heads * dim_head

    def w(k, shape):
        return jax.random.normal(k, shape, jnp.float32) * 0.02

    layers = []
    for _ in range(depth):
        key, k0, k1, k2, k3, k4, k5, k6, k7 = jax.random.split(key, 9)
        layers.append(dict(
            ln1_g=jnp.ones((dim,), jnp.float32),
            ln1_b=jnp.zeros((dim,), jnp.float32),
            # MaskedMLP(dim, inner*3): masked linear; all-ones mask here.
            wqkv=w(k0, (dim, inner * 3)), bqkv=w(k1, (inner * 3,)),
            wqkv_mask=jnp.ones((dim, inner * 3), jnp.float32),
            # to_out: MaskedMLP(inner, dim)
            wo=w(k2, (inner, dim)), bo=w(k3, (dim,)),
            wo_mask=jnp.ones((inner, dim), jnp.float32),
            ln2_g=jnp.ones((dim,), jnp.float32),
            ln2_b=jnp.zeros((dim,), jnp.float32),
            # FeedForward: MaskedMLP(dim, mlp) -> GELU -> MaskedMLP(mlp, dim)
            w1=w(k4, (dim, mlp_dim)), b1=w(k5, (mlp_dim,)),
            w1_mask=jnp.ones((dim, mlp_dim), jnp.float32),
            w2=w(k6, (mlp_dim, dim)), b2=w(k7, (dim,)),
            w2_mask=jnp.ones((mlp_dim, dim), jnp.float32),
        ))
    return layers


def stack_params(layers, *, heads, dim_head):
    """Apply MaskedMLP masks, stack per-layer weights along depth, and pre-cast
    matmul weights to bf16 (biases / LN params stay f32)."""
    depth = len(layers)
    dim = layers[0]["wqkv"].shape[0]
    inner = heads * dim_head
    mlp = layers[0]["w1"].shape[1]
    wdt = jnp.bfloat16

    def stack(name):
        return jnp.stack([lp[name] for lp in layers])

    def stack_masked(wname, mname, new_shape=None):
        ws = []
        for lp in layers:
            wm = lp[wname] * lp[mname]           # MaskedMLP: mask (.) weight
            if new_shape is not None:
                wm = wm.reshape(new_shape)
            ws.append(wm.astype(wdt))
        return jnp.stack(ws)

    return dict(
        ln1_g=stack("ln1_g").reshape(depth, 1, dim),
        ln1_b=stack("ln1_b").reshape(depth, 1, dim),
        wqkv=stack_masked("wqkv", "wqkv_mask"),
        bqkv=stack("bqkv").reshape(depth, 1, 3 * inner),
        # out-projection pre-split per head: (inner, D) -> (heads, dh, D)
        wo=stack_masked("wo", "wo_mask", new_shape=(heads, dim_head, dim)),
        bo=stack("bo").reshape(depth, 1, dim),
        ln2_g=stack("ln2_g").reshape(depth, 1, dim),
        ln2_b=stack("ln2_b").reshape(depth, 1, dim),
        w1=stack_masked("w1", "w1_mask"),
        b1=stack("b1").reshape(depth, 1, mlp),
        w2=stack_masked("w2", "w2_mask"),
        b2=stack("b2").reshape(depth, 1, dim),
    )


# -------------------------- pure-JAX reference ------------------------------ #

def reference_forward(x, layers, heads, dim_head):
    scale = dim_head ** (-0.5)
    for p in layers:
        B, N, D = x.shape
        h = _layernorm(x, p["ln1_g"], p["ln1_b"])
        qkv = h @ (p["wqkv"] * p["wqkv_mask"]) + p["bqkv"]
        q, k, v = jnp.split(qkv, 3, axis=-1)
        def to_h(t):  # 'b n (h d) -> b h n d'
            return t.reshape(B, N, heads, dim_head).transpose(0, 2, 1, 3)
        q, k, v = to_h(q), to_h(k), to_h(v)
        dots = jnp.einsum('bhqd,bhkd->bhqk', q, k) * scale
        attn = jax.nn.softmax(dots, axis=-1)
        o = jnp.einsum('bhqk,bhkd->bhqd', attn, v)
        o = o.transpose(0, 2, 1, 3).reshape(B, N, heads * dim_head)
        x = x + (o @ (p["wo"] * p["wo_mask"]) + p["bo"])
        h = _layernorm(x, p["ln2_g"], p["ln2_b"])
        h1 = jax.nn.gelu(h @ (p["w1"] * p["w1_mask"]) + p["b1"],
                         approximate=False)
        x = x + (h1 @ (p["w2"] * p["w2_mask"]) + p["b2"])
    return x


# --------------------------------- driver ----------------------------------- #

if __name__ == "__main__":
    # Small shapes consistent with the module: dim=32, depth=2, heads=4,
    # dim_head=8, mlp_dim=64; tokens x: [B=2, N=8, dim=32].
    dim, depth, heads, dim_head, mlp_dim = 32, 2, 4, 8, 64
    B, N = 2, 8

    key = jax.random.PRNGKey(0)
    key, kx, kp = jax.random.split(key, 3)
    x = jax.random.normal(kx, (B, N, dim), jnp.float32)
    layers = init_params(kp, dim, depth, heads, dim_head, mlp_dim)
    stacked = stack_params(layers, heads=heads, dim_head=dim_head)

    fwd = jax.jit(functools.partial(masked_transformer_forward,
                                    heads=heads, dim_head=dim_head))
    out = fwd(x, stacked)
    jax.block_until_ready(out)

    ref = reference_forward(x, layers, heads, dim_head)
    err = float(jnp.max(jnp.abs(out - ref)))

    assert out.shape == (B, N, dim) and out.dtype == jnp.float32
    assert bool(jnp.all(jnp.isfinite(out)))
    # bf16 MXU inputs + approx softmax reciprocal => loose tolerance.
    assert err < 5e-2, f"max abs error vs reference: {err}"
    print("KERNEL_OK")
</pallas_src>

<mosaic_0001>
module attributes {stable_mosaic.version = 11 : i64} {
  func.func @_fused_transformer_kernel(%arg0: i32, %arg1: i32, %arg2: memref<1x8x32xf32, #tpu.memory_space<vmem>>, %arg3: memref<1x1x32xf32, #tpu.memory_space<vmem>>, %arg4: memref<1x1x32xf32, #tpu.memory_space<vmem>>, %arg5: memref<1x32x96xbf16, #tpu.memory_space<vmem>>, %arg6: memref<1x1x96xf32, #tpu.memory_space<vmem>>, %arg7: memref<1x4x8x32xbf16, #tpu.memory_space<vmem>>, %arg8: memref<1x1x32xf32, #tpu.memory_space<vmem>>, %arg9: memref<1x1x32xf32, #tpu.memory_space<vmem>>, %arg10: memref<1x1x32xf32, #tpu.memory_space<vmem>>, %arg11: memref<1x32x64xbf16, #tpu.memory_space<vmem>>, %arg12: memref<1x1x64xf32, #tpu.memory_space<vmem>>, %arg13: memref<1x64x32xbf16, #tpu.memory_space<vmem>>, %arg14: memref<1x1x32xf32, #tpu.memory_space<vmem>>, %arg15: memref<1x8x32xf32, #tpu.memory_space<vmem>>, %arg16: memref<8x32xf32, #tpu.memory_space<vmem>>) attributes {dimension_semantics = [#tpu.dimension_semantics<parallel>, #tpu.dimension_semantics<arbitrary>], iteration_bounds = array<i64: 2, 2>, scalar_prefetch = 0 : i64, scratch_operands = 1 : i64, tpu.core_type = #tpu.core_type<tc>, window_params = [{transform_indices = @transform_0, window_bounds = array<i64: 1, 8, 32>}, {transform_indices = @transform_1, window_bounds = array<i64: 1, 1, 32>}, {transform_indices = @transform_2, window_bounds = array<i64: 1, 1, 32>}, {transform_indices = @transform_3, window_bounds = array<i64: 1, 32, 96>}, {transform_indices = @transform_4, window_bounds = array<i64: 1, 1, 96>}, {transform_indices = @transform_5, window_bounds = array<i64: 1, 4, 8, 32>}, {transform_indices = @transform_6, window_bounds = array<i64: 1, 1, 32>}, {transform_indices = @transform_7, window_bounds = array<i64: 1, 1, 32>}, {transform_indices = @transform_8, window_bounds = array<i64: 1, 1, 32>}, {transform_indices = @transform_9, window_bounds = array<i64: 1, 32, 64>}, {transform_indices = @transform_10, window_bounds = array<i64: 1, 1, 64>}, {transform_indices = @transform_11, window_bounds = array<i64: 1, 64, 32>}, {transform_indices = @transform_12, window_bounds = array<i64: 1, 1, 32>}, {transform_indices = @transform_13, window_bounds = array<i64: 1, 8, 32>}]} {
    %c0_i32 = arith.constant 0 : i32
    %0 = arith.cmpi eq, %arg1, %c0_i32 : i32
    %1 = arith.extui %0 : i1 to i32
    %c0_i32_0 = arith.constant 0 : i32
    %2 = arith.cmpi ne, %1, %c0_i32_0 : i32
    scf.if %2 {
      %c0_76 = arith.constant 0 : index
      %c0_77 = arith.constant 0 : index
      %c0_78 = arith.constant 0 : index
      %165 = vector.load %arg2[%c0_76, %c0_77, %c0_78] : memref<1x8x32xf32, #tpu.memory_space<vmem>>, vector<1x8x32xf32>
      %166 = vector.shape_cast %165 : vector<1x8x32xf32> to vector<8x32xf32>
      %c0_79 = arith.constant 0 : index
      %c0_80 = arith.constant 0 : index
      %167 = vector.load %arg16[%c0_79, %c0_80] : memref<8x32xf32, #tpu.memory_space<vmem>>, vector<8x32xf32>
      tpu.vector_store %arg16[%c0_79, %c0_80], %166 {strides = array<i32>} : memref<8x32xf32, #tpu.memory_space<vmem>>, vector<8x32xf32>,
    } else {
    }
    %c0 = arith.constant 0 : index
    %c0_1 = arith.constant 0 : index
    %3 = vector.load %arg16[%c0, %c0_1] : memref<8x32xf32, #tpu.memory_space<vmem>>, vector<8x32xf32>
    %c0_2 = arith.constant 0 : index
    %c0_3 = arith.constant 0 : index
    %c0_4 = arith.constant 0 : index
    %4 = vector.load %arg3[%c0_2, %c0_3, %c0_4] : memref<1x1x32xf32, #tpu.memory_space<vmem>>, vector<1x1x32xf32>
    %5 = vector.shape_cast %4 : vector<1x1x32xf32> to vector<1x32xf32>
    %c0_5 = arith.constant 0 : index
    %c0_6 = arith.constant 0 : index
    %c0_7 = arith.constant 0 : index
    %6 = vector.load %arg4[%c0_5, %c0_6, %c0_7] : memref<1x1x32xf32, #tpu.memory_space<vmem>>, vector<1x1x32xf32>
    %7 = vector.shape_cast %6 : vector<1x1x32xf32> to vector<1x32xf32>
    %cst = arith.constant dense<0.000000e+00> : vector<8xf32>
    %8 = vector.multi_reduction <add>, %3, %cst [1] : vector<8x32xf32> to vector<8xf32>
    %9 = vector.shape_cast %8 : vector<8xf32> to vector<8x1xf32>
    %cst_8 = arith.constant 3.200000e+01 : f32
    %10 = vector.broadcast %cst_8 : f32 to vector<8x1xf32>
    %11 = arith.divf %9, %10 : vector<8x1xf32>
    %12 = vector.broadcast %11 : vector<8x1xf32> to vector<8x32xf32>
    %13 = arith.subf %3, %12 : vector<8x32xf32>
    %14 = arith.mulf %13, %13 : vector<8x32xf32>
    %cst_9 = arith.constant dense<0.000000e+00> : vector<8xf32>
    %15 = vector.multi_reduction <add>, %14, %cst_9 [1] : vector<8x32xf32> to vector<8xf32>
    %16 = vector.shape_cast %15 : vector<8xf32> to vector<8x1xf32>
    %cst_10 = arith.constant 3.200000e+01 : f32
    %17 = vector.broadcast %cst_10 : f32 to vector<8x1xf32>
    %18 = arith.divf %16, %17 : vector<8x1xf32>
    %19 = vector.broadcast %11 : vector<8x1xf32> to vector<8x32xf32>
    %20 = arith.subf %3, %19 : vector<8x32xf32>
    %cst_11 = arith.constant 9.99999974E-6 : f32
    %21 = vector.broadcast %cst_11 : f32 to vector<8x1xf32>
    %22 = arith.addf %18, %21 : vector<8x1xf32>
    %23 = math.rsqrt %22 : vector<8x1xf32>
    %24 = vector.broadcast %23 : vector<8x1xf32> to vector<8x32xf32>
    %25 = arith.mulf %20, %24 : vector<8x32xf32>
    %26 = vector.broadcast %5 : vector<1x32xf32> to vector<8x32xf32>
    %27 = arith.mulf %25, %26 : vector<8x32xf32>
    %28 = vector.broadcast %7 : vector<1x32xf32> to vector<8x32xf32>
    %29 = arith.addf %27, %28 : vector<8x32xf32>
    %30 = arith.truncf %29 : vector<8x32xf32> to vector<8x32xbf16>
    %c0_12 = arith.constant 0 : index
    %c0_13 = arith.constant 0 : index
    %c0_14 = arith.constant 0 : index
    %31 = vector.load %arg5[%c0_12, %c0_13, %c0_14] : memref<1x32x96xbf16, #tpu.memory_space<vmem>>, vector<1x32x96xbf16>
    %32 = vector.shape_cast %31 : vector<1x32x96xbf16> to vector<32x96xbf16>
    %cst_15 = arith.constant dense<0.000000e+00> : vector<8x96xf32>
    %33 = tpu.matmul %30, %32, %cst_15 {dimension_numbers = #tpu.dot_dimension_numbers<[1], [0], [0], [1], [0, 0, 1, 1], [], []>} : vector<8x32xbf16>, vector<32x96xbf16>, vector<8x96xf32> -> vector<8x96xf32>
    %c0_16 = arith.constant 0 : index
    %c0_17 = arith.constant 0 : index
    %c0_18 = arith.constant 0 : index
    %34 = vector.load %arg6[%c0_16, %c0_17, %c0_18] : memref<1x1x96xf32, #tpu.memory_space<vmem>>, vector<1x1x96xf32>
    %35 = vector.shape_cast %34 : vector<1x1x96xf32> to vector<1x96xf32>
    %36 = vector.broadcast %35 : vector<1x96xf32> to vector<8x96xf32>
    %37 = arith.addf %33, %36 : vector<8x96xf32>
    %38 = vector.extract_strided_slice %37 {offsets = [0, 0], sizes = [8, 32], strides = [1, 1]} : vector<8x96xf32> to vector<8x32xf32>
    %39 = tpu.transpose %38, [1, 0] : vector<8x32xf32> -> vector<32x8xf32>
    %40 = vector.shape_cast %39 : vector<32x8xf32> to vector<4x8x8xf32>
    %41 = tpu.transpose %40, [0, 2, 1] : vector<4x8x8xf32> -> vector<4x8x8xf32>
    %cst_19 = arith.constant 0.353553385 : f32
    %42 = vector.broadcast %cst_19 : f32 to vector<4x8x8xf32>
    %43 = arith.mulf %41, %42 : vector<4x8x8xf32>
    %44 = vector.extract_strided_slice %37 {offsets = [0, 32], sizes = [8, 32], strides = [1, 1]} : vector<8x96xf32> to vector<8x32xf32>
    %45 = tpu.transpose %44, [1, 0] : vector<8x32xf32> -> vector<32x8xf32>
    %46 = vector.shape_cast %45 : vector<32x8xf32> to vector<4x8x8xf32>
    %47 = tpu.transpose %46, [0, 2, 1] : vector<4x8x8xf32> -> vector<4x8x8xf32>
    %48 = vector.extract_strided_slice %37 {offsets = [0, 64], sizes = [8, 32], strides = [1, 1]} : vector<8x96xf32> to vector<8x32xf32>
    %49 = tpu.transpose %48, [1, 0] : vector<8x32xf32> -> vector<32x8xf32>
    %50 = vector.shape_cast %49 : vector<32x8xf32> to vector<4x8x8xf32>
    %51 = tpu.transpose %50, [0, 2, 1] : vector<4x8x8xf32> -> vector<4x8x8xf32>
    %52 = arith.truncf %43 : vector<4x8x8xf32> to vector<4x8x8xbf16>
    %53 = arith.truncf %47 : vector<4x8x8xf32> to vector<4x8x8xbf16>
    "tpu.trace_start"() <{level = 10 : i32, message = "hqd,hkd->hqk"}> : () -> ()
    %cst_20 = arith.constant dense<0.000000e+00> : vector<4x8x8xf32>
    %54 = tpu.matmul %52, %53, %cst_20 {dimension_numbers = #tpu.dot_dimension_numbers<[2], [2], [1], [1], [0, 0, 0, 1, 1, 1], [0], [0]>} : vector<4x8x8xbf16>, vector<4x8x8xbf16>, vector<4x8x8xf32> -> vector<4x8x8xf32>
    "tpu.trace_stop"() : () -> ()
    %cst_21 = arith.constant dense<0xFF800000> : vector<4x8xf32>
    %55 = vector.multi_reduction <maximumf>, %54, %cst_21 [2] : vector<4x8x8xf32> to vector<4x8xf32>
    %56 = vector.shape_cast %55 : vector<4x8xf32> to vector<4x8x1xf32>
    %57 = vector.broadcast %56 : vector<4x8x1xf32> to vector<4x8x8xf32>
    %58 = arith.subf %54, %57 : vector<4x8x8xf32>
    %59 = math.exp %58 : vector<4x8x8xf32>
    %cst_22 = arith.constant dense<0.000000e+00> : vector<4x8xf32>
    %60 = vector.multi_reduction <add>, %59, %cst_22 [2] : vector<4x8x8xf32> to vector<4x8xf32>
    %61 = vector.shape_cast %60 : vector<4x8xf32> to vector<4x8x1xf32>
    %62 = tpu.reciprocal %61 {approx = true} : vector<4x8x1xf32> -> vector<4x8x1xf32>
    %63 = vector.broadcast %62 : vector<4x8x1xf32> to vector<4x8x8xf32>
    %64 = arith.mulf %59, %63 : vector<4x8x8xf32>
    %65 = arith.truncf %64 : vector<4x8x8xf32> to vector<4x8x8xbf16>
    %66 = arith.truncf %51 : vector<4x8x8xf32> to vector<4x8x8xbf16>
    "tpu.trace_start"() <{level = 10 : i32, message = "hqk,hkd->hqd"}> : () -> ()
    %cst_23 = arith.constant dense<0.000000e+00> : vector<4x8x8xf32>
    %67 = tpu.matmul %65, %66, %cst_23 {dimension_numbers = #tpu.dot_dimension_numbers<[2], [1], [1], [2], [0, 0, 0, 1, 1, 2], [0], [0]>} : vector<4x8x8xbf16>, vector<4x8x8xbf16>, vector<4x8x8xf32> -> vector<4x8x8xf32>
    "tpu.trace_stop"() : () -> ()
    %68 = arith.truncf %67 : vector<4x8x8xf32> to vector<4x8x8xbf16>
    %c0_24 = arith.constant 0 : index
    %c0_25 = arith.constant 0 : index
    %c0_26 = arith.constant 0 : index
    %c0_27 = arith.constant 0 : index
    %69 = vector.load %arg7[%c0_24, %c0_25, %c0_26, %c0_27] : memref<1x4x8x32xbf16, #tpu.memory_space<vmem>>, vector<1x4x8x32xbf16>
    %70 = vector.shape_cast %69 : vector<1x4x8x32xbf16> to vector<4x8x32xbf16>
    "tpu.trace_start"() <{level = 10 : i32, message = "hnd,hdc->hnc"}> : () -> ()
    %cst_28 = arith.constant dense<0.000000e+00> : vector<4x8x32xf32>
    %71 = tpu.matmul %68, %70, %cst_28 {dimension_numbers = #tpu.dot_dimension_numbers<[2], [1], [1], [2], [0, 0, 0, 1, 1, 2], [0], [0]>} : vector<4x8x8xbf16>, vector<4x8x32xbf16>, vector<4x8x32xf32> -> vector<4x8x32xf32>
    "tpu.trace_stop"() : () -> ()
    %cst_29 = arith.constant dense<0.000000e+00> : vector<8x32xf32>
    %72 = vector.multi_reduction <add>, %71, %cst_29 [0] : vector<4x8x32xf32> to vector<8x32xf32>
    %c0_30 = arith.constant 0 : index
    %c0_31 = arith.constant 0 : index
    %c0_32 = arith.constant 0 : index
    %73 = vector.load %arg8[%c0_30, %c0_31, %c0_32] : memref<1x1x32xf32, #tpu.memory_space<vmem>>, vector<1x1x32xf32>
    %74 = vector.shape_cast %73 : vector<1x1x32xf32> to vector<1x32xf32>
    %75 = vector.broadcast %74 : vector<1x32xf32> to vector<8x32xf32>
    %76 = arith.addf %72, %75 : vector<8x32xf32>
    %77 = arith.addf %3, %76 : vector<8x32xf32>
    %c0_33 = arith.constant 0 : index
    %c0_34 = arith.constant 0 : index
    %c0_35 = arith.constant 0 : index
    %78 = vector.load %arg9[%c0_33, %c0_34, %c0_35] : memref<1x1x32xf32, #tpu.memory_space<vmem>>, vector<1x1x32xf32>
    %79 = vector.shape_cast %78 : vector<1x1x32xf32> to vector<1x32xf32>
    %c0_36 = arith.constant 0 : index
    %c0_37 = arith.constant 0 : index
    %c0_38 = arith.constant 0 : index
    %80 = vector.load %arg10[%c0_36, %c0_37, %c0_38] : memref<1x1x32xf32, #tpu.memory_space<vmem>>, vector<1x1x32xf32>
    %81 = vector.shape_cast %80 : vector<1x1x32xf32> to vector<1x32xf32>
    %cst_39 = arith.constant dense<0.000000e+00> : vector<8xf32>
    %82 = vector.multi_reduction <add>, %77, %cst_39 [1] : vector<8x32xf32> to vector<8xf32>
    %83 = vector.shape_cast %82 : vector<8xf32> to vector<8x1xf32>
    %cst_40 = arith.constant 3.200000e+01 : f32
    %84 = vector.broadcast %cst_40 : f32 to vector<8x1xf32>
    %85 = arith.divf %83, %84 : vector<8x1xf32>
    %86 = vector.broadcast %85 : vector<8x1xf32> to vector<8x32xf32>
    %87 = arith.subf %77, %86 : vector<8x32xf32>
    %88 = arith.mulf %87, %87 : vector<8x32xf32>
    %cst_41 = arith.constant dense<0.000000e+00> : vector<8xf32>
    %89 = vector.multi_reduction <add>, %88, %cst_41 [1] : vector<8x32xf32> to vector<8xf32>
    %90 = vector.shape_cast %89 : vector<8xf32> to vector<8x1xf32>
    %cst_42 = arith.constant 3.200000e+01 : f32
    %91 = vector.broadcast %cst_42 : f32 to vector<8x1xf32>
    %92 = arith.divf %90, %91 : vector<8x1xf32>
    %93 = vector.broadcast %85 : vector<8x1xf32> to vector<8x32xf32>
    %94 = arith.subf %77, %93 : vector<8x32xf32>
    %cst_43 = arith.constant 9.99999974E-6 : f32
    %95 = vector.broadcast %cst_43 : f32 to vector<8x1xf32>
    %96 = arith.addf %92, %95 : vector<8x1xf32>
    %97 = math.rsqrt %96 : vector<8x1xf32>
    %98 = vector.broadcast %97 : vector<8x1xf32> to vector<8x32xf32>
    %99 = arith.mulf %94, %98 : vector<8x32xf32>
    %100 = vector.broadcast %79 : vector<1x32xf32> to vector<8x32xf32>
    %101 = arith.mulf %99, %100 : vector<8x32xf32>
    %102 = vector.broadcast %81 : vector<1x32xf32> to vector<8x32xf32>
    %103 = arith.addf %101, %102 : vector<8x32xf32>
    %104 = arith.truncf %103 : vector<8x32xf32> to vector<8x32xbf16>
    %c0_44 = arith.constant 0 : index
    %c0_45 = arith.constant 0 : index
    %c0_46 = arith.constant 0 : index
    %105 = vector.load %arg11[%c0_44, %c0_45, %c0_46] : memref<1x32x64xbf16, #tpu.memory_space<vmem>>, vector<1x32x64xbf16>
    %106 = vector.shape_cast %105 : vector<1x32x64xbf16> to vector<32x64xbf16>
    %cst_47 = arith.constant dense<0.000000e+00> : vector<8x64xf32>
    %107 = tpu.matmul %104, %106, %cst_47 {dimension_numbers = #tpu.dot_dimension_numbers<[1], [0], [0], [1], [0, 0, 1, 1], [], []>} : vector<8x32xbf16>, vector<32x64xbf16>, vector<8x64xf32> -> vector<8x64xf32>
    %c0_48 = arith.constant 0 : index
    %c0_49 = arith.constant 0 : index
    %c0_50 = arith.constant 0 : index
    %108 = vector.load %arg12[%c0_48, %c0_49, %c0_50] : memref<1x1x64xf32, #tpu.memory_space<vmem>>, vector<1x1x64xf32>
    %109 = vector.shape_cast %108 : vector<1x1x64xf32> to vector<1x64xf32>
    %110 = vector.broadcast %109 : vector<1x64xf32> to vector<8x64xf32>
    %111 = arith.addf %107, %110 : vector<8x64xf32>
    %cst_51 = arith.constant 5.000000e-01 : f32
    %112 = vector.broadcast %cst_51 : f32 to vector<8x64xf32>
    %113 = arith.mulf %112, %111 : vector<8x64xf32>
    %cst_52 = arith.constant 0.707106769 : f32
    %114 = vector.broadcast %cst_52 : f32 to vector<8x64xf32>
    %115 = arith.mulf %111, %114 : vector<8x64xf32>
    %116 = math.absf %115 : vector<8x64xf32>
    %cst_53 = arith.constant 0.327591091 : f32
    %117 = vector.broadcast %cst_53 : f32 to vector<8x64xf32>
    %118 = arith.mulf %117, %116 : vector<8x64xf32>
    %cst_54 = arith.constant 1.000000e+00 : f32
    %119 = vector.broadcast %cst_54 : f32 to vector<8x64xf32>
    %120 = arith.addf %119, %118 : vector<8x64xf32>
    %cst_55 = arith.constant 1.000000e+00 : f32
    %121 = vector.broadcast %cst_55 : f32 to vector<8x64xf32>
    %122 = arith.divf %121, %120 : vector<8x64xf32>
    %cst_56 = arith.constant 1.06140542 : f32
    %123 = vector.broadcast %cst_56 : f32 to vector<8x64xf32>
    %124 = arith.mulf %123, %122 : vector<8x64xf32>
    %cst_57 = arith.constant -1.45315206 : f32
    %125 = vector.broadcast %cst_57 : f32 to vector<8x64xf32>
    %126 = arith.addf %124, %125 : vector<8x64xf32>
    %127 = arith.mulf %126, %122 : vector<8x64xf32>
    %cst_58 = arith.constant 1.42141378 : f32
    %128 = vector.broadcast %cst_58 : f32 to vector<8x64xf32>
    %129 = arith.addf %127, %128 : vector<8x64xf32>
    %130 = arith.mulf %129, %122 : vector<8x64xf32>
    %cst_59 = arith.constant -0.284496725 : f32
    %131 = vector.broadcast %cst_59 : f32 to vector<8x64xf32>
    %132 = arith.addf %130, %131 : vector<8x64xf32>
    %133 = arith.mulf %132, %122 : vector<8x64xf32>
    %cst_60 = arith.constant 0.254829586 : f32
    %134 = vector.broadcast %cst_60 : f32 to vector<8x64xf32>
    %135 = arith.addf %133, %134 : vector<8x64xf32>
    %136 = arith.mulf %135, %122 : vector<8x64xf32>
    %cst_61 = arith.constant 0.000000e+00 : f32
    %137 = vector.broadcast %cst_61 : f32 to vector<8x64xf32>
    %138 = arith.subf %137, %116 : vector<8x64xf32>
    %139 = arith.mulf %138, %116 : vector<8x64xf32>
    %140 = math.exp %139 : vector<8x64xf32>
    %141 = arith.mulf %136, %140 : vector<8x64xf32>
    %cst_62 = arith.constant 1.000000e+00 : f32
    %142 = vector.broadcast %cst_62 : f32 to vector<8x64xf32>
    %143 = arith.subf %142, %141 : vector<8x64xf32>
    %cst_63 = arith.constant 0.000000e+00 : f32
    %144 = vector.broadcast %cst_63 : f32 to vector<8x64xf32>
    %145 = arith.cmpf oge, %115, %144 : vector<8x64xf32>
    %cst_64 = arith.constant 0.000000e+00 : f32
    %146 = vector.broadcast %cst_64 : f32 to vector<8x64xf32>
    %147 = arith.subf %146, %143 : vector<8x64xf32>
    %148 = arith.select %145, %143, %147 : vector<8x64xi1>, vector<8x64xf32>
    %cst_65 = arith.constant 1.000000e+00 : f32
    %149 = vector.broadcast %cst_65 : f32 to vector<8x64xf32>
    %150 = arith.addf %149, %148 : vector<8x64xf32>
    %151 = arith.mulf %113, %150 : vector<8x64xf32>
    %152 = arith.truncf %151 : vector<8x64xf32> to vector<8x64xbf16>
    %c0_66 = arith.constant 0 : index
    %c0_67 = arith.constant 0 : index
    %c0_68 = arith.constant 0 : index
    %153 = vector.load %arg13[%c0_66, %c0_67, %c0_68] : memref<1x64x32xbf16, #tpu.memory_space<vmem>>, vector<1x64x32xbf16>
    %154 = vector.shape_cast %153 : vector<1x64x32xbf16> to vector<64x32xbf16>
    %cst_69 = arith.constant dense<0.000000e+00> : vector<8x32xf32>
    %155 = tpu.matmul %152, %154, %cst_69 {dimension_numbers = #tpu.dot_dimension_numbers<[1], [0], [0], [1], [0, 0, 1, 1], [], []>} : vector<8x64xbf16>, vector<64x32xbf16>, vector<8x32xf32> -> vector<8x32xf32>
    %c0_70 = arith.constant 0 : index
    %c0_71 = arith.constant 0 : index
    %c0_72 = arith.constant 0 : index
    %156 = vector.load %arg14[%c0_70, %c0_71, %c0_72] : memref<1x1x32xf32, #tpu.memory_space<vmem>>, vector<1x1x32xf32>
    %157 = vector.shape_cast %156 : vector<1x1x32xf32> to vector<1x32xf32>
    %158 = vector.broadcast %157 : vector<1x32xf32> to vector<8x32xf32>
    %159 = arith.addf %155, %158 : vector<8x32xf32>
    %160 = arith.addf %77, %159 : vector<8x32xf32>
    %c0_73 = arith.constant 0 : index
    %c0_74 = arith.constant 0 : index
    %161 = vector.load %arg16[%c0_73, %c0_74] : memref<8x32xf32, #tpu.memory_space<vmem>>, vector<8x32xf32>
    tpu.vector_store %arg16[%c0_73, %c0_74], %160 {strides = array<i32>} : memref<8x32xf32, #tpu.memory_space<vmem>>, vector<8x32xf32>,
    %c1_i32 = arith.constant 1 : i32
    %162 = arith.cmpi eq, %arg1, %c1_i32 : i32
    %163 = arith.extui %162 : i1 to i32
    %c0_i32_75 = arith.constant 0 : i32
    %164 = arith.cmpi ne, %163, %c0_i32_75 : i32
    scf.if %164 {
      %c0_76 = arith.constant 0 : index
      %c0_77 = arith.constant 0 : index
      %c0_78 = arith.constant 0 : index
      %165 = vector.load %arg15[%c0_76, %c0_77, %c0_78] : memref<1x8x32xf32, #tpu.memory_space<vmem>>, vector<1x8x32xf32>
      %166 = vector.shape_cast %165 : vector<1x8x32xf32> to vector<8x32xf32>
      %167 = vector.shape_cast %160 : vector<8x32xf32> to vector<1x8x32xf32>
      tpu.vector_store %arg15[%c0_76, %c0_77, %c0_78], %167 {strides = array<i32>} : memref<1x8x32xf32, #tpu.memory_space<vmem>>, vector<1x8x32xf32>,
    } else {
    }
    return
  }
  func.func @transform_0(%arg0: i32, %arg1: i32) -> (i32, i32, i32) {
    %c0_i32 = arith.constant 0 : i32
    %c0_i32_0 = arith.constant 0 : i32
    %c0_i32_1 = arith.constant 0 : i32
    return %arg0, %c0_i32, %c0_i32_0 : i32, i32, i32
  }
  func.func @transform_1(%arg0: i32, %arg1: i32) -> (i32, i32, i32) {
    %c0_i32 = arith.constant 0 : i32
    %c0_i32_0 = arith.constant 0 : i32
    %c0_i32_1 = arith.constant 0 : i32
    return %arg1, %c0_i32, %c0_i32_0 : i32, i32, i32
  }
  func.func @transform_2(%arg0: i32, %arg1: i32) -> (i32, i32, i32) {
    %c0_i32 = arith.constant 0 : i32
    %c0_i32_0 = arith.constant 0 : i32
    %c0_i32_1 = arith.constant 0 : i32
    return %arg1, %c0_i32, %c0_i32_0 : i32, i32, i32
  }
  func.func @transform_3(%arg0: i32, %arg1: i32) -> (i32, i32, i32) {
    %c0_i32 = arith.constant 0 : i32
    %c0_i32_0 = arith.constant 0 : i32
    %c0_i32_1 = arith.constant 0 : i32
    return %arg1, %c0_i32, %c0_i32_0 : i32, i32, i32
  }
  func.func @transform_4(%arg0: i32, %arg1: i32) -> (i32, i32, i32) {
    %c0_i32 = arith.constant 0 : i32
    %c0_i32_0 = arith.constant 0 : i32
    %c0_i32_1 = arith.constant 0 : i32
    return %arg1, %c0_i32, %c0_i32_0 : i32, i32, i32
  }
  func.func @transform_5(%arg0: i32, %arg1: i32) -> (i32, i32, i32, i32) {
    %c0_i32 = arith.constant 0 : i32
    %c0_i32_0 = arith.constant 0 : i32
    %c0_i32_1 = arith.constant 0 : i32
    %c0_i32_2 = arith.constant 0 : i32
    return %arg1, %c0_i32, %c0_i32_0, %c0_i32_1 : i32, i32, i32, i32
  }
  func.func @transform_6(%arg0: i32, %arg1: i32) -> (i32, i32, i32) {
    %c0_i32 = arith.constant 0 : i32
    %c0_i32_0 = arith.constant 0 : i32
    %c0_i32_1 = arith.constant 0 : i32
    return %arg1, %c0_i32, %c0_i32_0 : i32, i32, i32
  }
  func.func @transform_7(%arg0: i32, %arg1: i32) -> (i32, i32, i32) {
    %c0_i32 = arith.constant 0 : i32
    %c0_i32_0 = arith.constant 0 : i32
    %c0_i32_1 = arith.constant 0 : i32
    return %arg1, %c0_i32, %c0_i32_0 : i32, i32, i32
  }
  func.func @transform_8(%arg0: i32, %arg1: i32) -> (i32, i32, i32) {
    %c0_i32 = arith.constant 0 : i32
    %c0_i32_0 = arith.constant 0 : i32
    %c0_i32_1 = arith.constant 0 : i32
    return %arg1, %c0_i32, %c0_i32_0 : i32, i32, i32
  }
  func.func @transform_9(%arg0: i32, %arg1: i32) -> (i32, i32, i32) {
    %c0_i32 = arith.constant 0 : i32
    %c0_i32_0 = arith.constant 0 : i32
    %c0_i32_1 = arith.constant 0 : i32
    return %arg1, %c0_i32, %c0_i32_0 : i32, i32, i32
  }
  func.func @transform_10(%arg0: i32, %arg1: i32) -> (i32, i32, i32) {
    %c0_i32 = arith.constant 0 : i32
    %c0_i32_0 = arith.constant 0 : i32
    %c0_i32_1 = arith.constant 0 : i32
    return %arg1, %c0_i32, %c0_i32_0 : i32, i32, i32
  }
  func.func @transform_11(%arg0: i32, %arg1: i32) -> (i32, i32, i32) {
    %c0_i32 = arith.constant 0 : i32
    %c0_i32_0 = arith.constant 0 : i32
    %c0_i32_1 = arith.constant 0 : i32
    return %arg1, %c0_i32, %c0_i32_0 : i32, i32, i32
  }
  func.func @transform_12(%arg0: i32, %arg1: i32) -> (i32, i32, i32) {
    %c0_i32 = arith.constant 0 : i32
    %c0_i32_0 = arith.constant 0 : i32
    %c0_i32_1 = arith.constant 0 : i32
    return %arg1, %c0_i32, %c0_i32_0 : i32, i32, i32
  }
  func.func @transform_13(%arg0: i32, %arg1: i32) -> (i32, i32, i32) {
    %c0_i32 = arith.constant 0 : i32
    %c0_i32_0 = arith.constant 0 : i32
    %c0_i32_1 = arith.constant 0 : i32
    return %arg0, %c0_i32, %c0_i32_0 : i32, i32, i32
  }
}

</mosaic_0001>

<llo_original>
// kernel: masked_transformer_forward.1
$region0: #{masked_transformer_forward.1}
  #allocation0 [shape = 'u32[]', space=smem, size = 0x4, offset = 0x4, fixed_abs, tag = 'smem constant byte address 0x4 - core index']
  #allocation1 [shape = 'u32[144,128]{1,0:T(1,128)}', space=vmem, size = 0x12000, scoped, tag = 'internal scratch']
  #allocation2 [shape = 'f32[8,32]{1,0:T(8,128)}', space=vmem, size = 0x1000, scoped, tag = 'scratch operand']
  %s0 = inlined_call_operand.hbm [shape: f32[2,8,32], index: 0, kind: input, shape index: {}, may-alias: {0,13}]
  %s1 = inlined_call_operand.vmem [shape: f32[2,1,32], index: 1, kind: input, shape index: {}]
  %s2 = inlined_call_operand.vmem [shape: f32[2,1,32], index: 2, kind: input, shape index: {}]
  %s3 = inlined_call_operand.vmem [shape: bf16[2,32,96], index: 3, kind: input, shape index: {}]
  %s4 = inlined_call_operand.vmem [shape: f32[2,1,96], index: 4, kind: input, shape index: {}]
  %s5 = inlined_call_operand.vmem [shape: bf16[2,4,8,32], index: 5, kind: input, shape index: {}]
  %s6 = inlined_call_operand.vmem [shape: f32[2,1,32], index: 6, kind: input, shape index: {}]
  %s7 = inlined_call_operand.vmem [shape: f32[2,1,32], index: 7, kind: input, shape index: {}]
  %s8 = inlined_call_operand.vmem [shape: f32[2,1,32], index: 8, kind: input, shape index: {}]
  %s9 = inlined_call_operand.vmem [shape: bf16[2,32,64], index: 9, kind: input, shape index: {}]
  %s10 = inlined_call_operand.vmem [shape: f32[2,1,64], index: 10, kind: input, shape index: {}]
  %s11 = inlined_call_operand.vmem [shape: bf16[2,64,32], index: 11, kind: input, shape index: {}]
  %s12 = inlined_call_operand.vmem [shape: f32[2,1,32], index: 12, kind: input, shape index: {}]
  %s13 = inlined_call_operand.hbm [shape: f32[2,8,32], index: 13, kind: output, shape index: {}, may-alias: {0,13}]
  %s14 = sld [smem:[#allocation0]]
  $region97: #{masked_transformer_forward.1} parent=0
    _
  %s16 = ssub.s32 1, %s14
  %s17 = scalar_select 0, %s16, %s14
  $region1: #{masked_transformer_forward.1} parent=0
    #allocation3 [shape = 'u8[8192]{0}', space=vmem, size = 0x2000, scoped, tag = 'input window, operand 0']
    #allocation4 [shape = 's32[2]{0}', space=sflag, size = 0x8, scoped, tag = 'scoped memory for masked_transformer_forward.1']
    #allocation5 [shape = 's32[2]{0}', space=sflag, size = 0x8, scoped, tag = 'scoped memory for masked_transformer_forward.1']
    #allocation6 [shape = 'u8[8192]{0}', space=vmem, size = 0x2000, scoped, tag = 'output window, operand 0']
    %18 = vsyncpa [#allocation4], 0
    %s19 = scalar_lea.sflag [#allocation4], 1
    %20 = vsyncpa %s19, 0
    %21 = vsyncpa [#allocation5], 0
    %s22 = scalar_lea.sflag [#allocation5], 1
    %23 = vsyncpa %s22, 0
    loop: start=0, step=1, limit=6
    $region2: #{masked_transformer_forward.1} parent=1 // loop_pre_header
      _
    $region3: #{masked_transformer_forward.1} parent=1 // loop_header
      %s25 = sphi 0, %s29
      %p26 = scmp.ge.s32.totalorder %s25, 6
      %s32 = sphi 0, %s44
      %s33 = sphi 0, %s40
      %s34 = sphi 0, %s32
      %s35 = sphi 0, %s33
      %s36 = sphi 0, %s34
      %s37 = sphi 0, %s35
      %s47 = sphi 0, %s49
      %s50 = sphi 0, %s47
      %s51 = sphi 0, %s50
      %s67 = sphi 0, %s51
      %s73 = sphi 0, %s75
      %s76 = sphi 0, %s73
      %s77 = sphi 0, %s76
      %s93 = sphi 0, %s77
      %s99 = sphi 0, %s101
      %s102 = sphi 0, %s99
      %s103 = sphi 0, %s102
      %s119 = sphi 0, %s103
      %s125 = sphi 0, %s127
      %s128 = sphi 0, %s125
      %s129 = sphi 0, %s128
      %s145 = sphi 0, %s129
      %s151 = sphi 0, %s153
      %s154 = sphi 0, %s151
      %s155 = sphi 0, %s154
      %s171 = sphi 0, %s155
      %s177 = sphi 0, %s179
      %s180 = sphi 0, %s177
      %s181 = sphi 0, %s180
      %s197 = sphi 0, %s181
      %s203 = sphi 0, %s205
      %s206 = sphi 0, %s203
      %s207 = sphi 0, %s206
      %s223 = sphi 0, %s207
      %s229 = sphi 0, %s231
      %s232 = sphi 0, %s229
      %s233 = sphi 0, %s232
      %s249 = sphi 0, %s233
      %s255 = sphi 0, %s257
      %s258 = sphi 0, %s255
      %s259 = sphi 0, %s258
      %s275 = sphi 0, %s259
      %s281 = sphi 0, %s283
      %s284 = sphi 0, %s281
      %s285 = sphi 0, %s284
      %s301 = sphi 0, %s285
      %s307 = sphi 0, %s309
      %s310 = sphi 0, %s307
      %s311 = sphi 0, %s310
      %s327 = sphi 0, %s311
      %s333 = sphi 0, %s335
      %s336 = sphi 0, %s333
      %s337 = sphi 0, %s336
      %s353 = sphi 0, %s337
      %s359 = sphi 0, %s361
      %s362 = sphi 0, %s359
      %s363 = sphi 0, %s362
      %s379 = sphi 0, %s363
      %s385 = sphi 0, %s387
      %s388 = sphi 0, %s385
      %s389 = sphi 0, %s388
      %s405 = sphi 0, %s389
    $region4: #{masked_transformer_forward.1} parent=1 // loop_header_branch
      %28 = sbr.rel (%p26) target = $region8
    $region5: #{masked_transformer_forward.1} parent=1 // loop_body
      %s30 = ssub.s32 %s25, 1
      %s31 = ssub.s32 %s25, 2
      %s38 = sadd.s32 1, %s33
      %p39 = scmp.ge.s32.totalorder %s38, 2
      %s40 = scalar_select %p39, 0, %s38
      %s41 = sadd.s32 1, %s32
      %s42 = scalar_select %p39, %s41, %s32
      %p43 = scmp.ge.s32.totalorder %s42, 2
      %s44 = scalar_select %p43, 0, %s42
      %s45 = ssub.s32 %s32, %s44
      %p46 = scmp.eq.s32.totalorder %s45, 0
      %s48 = sadd.s32 %s47, 1
      %s49 = scalar_select %p46, %s47, %s48
      %p52 = pneg %p46
      %p53 = scmp.eq.s32.totalorder %s25, 3
      %p54 = por %p52, %p53
      %p55 = scmp.ne.s32.totalorder %s47, %s50
      %p56 = scmp.eq.s32.totalorder %s25, 0
      %p57 = por %p55, %p56
      %p58 = scmp.ne.s32.totalorder %s47, %s50
      %p59 = scmp.eq.s32.totalorder %s30, 3
      %p60 = por %p58, %p59
      %p61 = scmp.ne.s32.totalorder %s50, %s51
      %p62 = scmp.eq.s32.totalorder %s30, 0
      %p63 = por %p61, %p62
      %p64 = scmp.ne.s32.totalorder %s50, %s51
      %p65 = scmp.eq.s32.totalorder %s31, 3
      %p66 = por %p64, %p65
      %p68 = scmp.ne.s32.totalorder %s51, %s67
      %p69 = scmp.eq.s32.totalorder %s31, 0
      %p70 = por %p68, %p69
      %s71 = ssub.s32 %s33, %s40
      %p72 = scmp.eq.s32.totalorder %s71, 0
      %s74 = sadd.s32 %s73, 1
      %s75 = scalar_select %p72, %s73, %s74
      %p78 = pneg %p72
      %p79 = scmp.eq.s32.totalorder %s25, 3
      %p80 = por %p78, %p79
      %p81 = scmp.ne.s32.totalorder %s73, %s76
      %p82 = scmp.eq.s32.totalorder %s25, 0
      %p83 = por %p81, %p82
      %p84 = scmp.ne.s32.totalorder %s73, %s76
      %p85 = scmp.eq.s32.totalorder %s30, 3
      %p86 = por %p84, %p85
      %p87 = scmp.ne.s32.totalorder %s76, %s77
      %p88 = scmp.eq.s32.totalorder %s30, 0
      %p89 = por %p87, %p88
      %p90 = scmp.ne.s32.totalorder %s76, %s77
      %p91 = scmp.eq.s32.totalorder %s31, 3
      %p92 = por %p90, %p91
      %p94 = scmp.ne.s32.totalorder %s77, %s93
      %p95 = scmp.eq.s32.totalorder %s31, 0
      %p96 = por %p94, %p95
      %s97 = ssub.s32 %s33, %s40
      %p98 = scmp.eq.s32.totalorder %s97, 0
      %s100 = sadd.s32 %s99, 1
      %s101 = scalar_select %p98, %s99, %s100
      %p104 = pneg %p98
      %p105 = scmp.eq.s32.totalorder %s25, 3
      %p106 = por %p104, %p105
      %p107 = scmp.ne.s32.totalorder %s99, %s102
      %p108 = scmp.eq.s32.totalorder %s25, 0
      %p109 = por %p107, %p108
      %p110 = scmp.ne.s32.totalorder %s99, %s102
      %p111 = scmp.eq.s32.totalorder %s30, 3
      %p112 = por %p110, %p111
      %p113 = scmp.ne.s32.totalorder %s102, %s103
      %p114 = scmp.eq.s32.totalorder %s30, 0
      %p115 = por %p113, %p114
      %p116 = scmp.ne.s32.totalorder %s102, %s103
      %p117 = scmp.eq.s32.totalorder %s31, 3
      %p118 = por %p116, %p117
      %p120 = scmp.ne.s32.totalorder %s103, %s119
      %p121 = scmp.eq.s32.totalorder %s31, 0
      %p122 = por %p120, %p121
      %s123 = ssub.s32 %s33, %s40
      %p124 = scmp.eq.s32.totalorder %s123, 0
      %s126 = sadd.s32 %s125, 1
      %s127 = scalar_select %p124, %s125, %s126
      %p130 = pneg %p124
      %p131 = scmp.eq.s32.totalorder %s25, 3
      %p132 = por %p130, %p131
      %p133 = scmp.ne.s32.totalorder %s125, %s128
      %p134 = scmp.eq.s32.totalorder %s25, 0
      %p135 = por %p133, %p134
      %p136 = scmp.ne.s32.totalorder %s125, %s128
      %p137 = scmp.eq.s32.totalorder %s30, 3
      %p138 = por %p136, %p137
      %p139 = scmp.ne.s32.totalorder %s128, %s129
      %p140 = scmp.eq.s32.totalorder %s30, 0
      %p141 = por %p139, %p140
      %p142 = scmp.ne.s32.totalorder %s128, %s129
      %p143 = scmp.eq.s32.totalorder %s31, 3
      %p144 = por %p142, %p143
      %p146 = scmp.ne.s32.totalorder %s129, %s145
      %p147 = scmp.eq.s32.totalorder %s31, 0
      %p148 = por %p146, %p147
      %s149 = ssub.s32 %s33, %s40
      %p150 = scmp.eq.s32.totalorder %s149, 0
      %s152 = sadd.s32 %s151, 1
      %s153 = scalar_select %p150, %s151, %s152
      %p156 = pneg %p150
      %p157 = scmp.eq.s32.totalorder %s25, 3
      %p158 = por %p156, %p157
      %p159 = scmp.ne.s32.totalorder %s151, %s154
      %p160 = scmp.eq.s32.totalorder %s25, 0
      %p161 = por %p159, %p160
      %p162 = scmp.ne.s32.totalorder %s151, %s154
      %p163 = scmp.eq.s32.totalorder %s30, 3
      %p164 = por %p162, %p163
      %p165 = scmp.ne.s32.totalorder %s154, %s155
      %p166 = scmp.eq.s32.totalorder %s30, 0
      %p167 = por %p165, %p166
      %p168 = scmp.ne.s32.totalorder %s154, %s155
      %p169 = scmp.eq.s32.totalorder %s31, 3
      %p170 = por %p168, %p169
      %p172 = scmp.ne.s32.totalorder %s155, %s171
      %p173 = scmp.eq.s32.totalorder %s31, 0
      %p174 = por %p172, %p173
      %s175 = ssub.s32 %s33, %s40
      %p176 = scmp.eq.s32.totalorder %s175, 0
      %s178 = sadd.s32 %s177, 1
      %s179 = scalar_select %p176, %s177, %s178
      %p182 = pneg %p176
      %p183 = scmp.eq.s32.totalorder %s25, 3
      %p184 = por %p182, %p183
      %p185 = scmp.ne.s32.totalorder %s177, %s180
      %p186 = scmp.eq.s32.totalorder %s25, 0
      %p187 = por %p185, %p186
      %p188 = scmp.ne.s32.totalorder %s177, %s180
      %p189 = scmp.eq.s32.totalorder %s30, 3
      %p190 = por %p188, %p189
      %p191 = scmp.ne.s32.totalorder %s180, %s181
      %p192 = scmp.eq.s32.totalorder %s30, 0
      %p193 = por %p191, %p192
      %p194 = scmp.ne.s32.totalorder %s180, %s181
      %p195 = scmp.eq.s32.totalorder %s31, 3
      %p196 = por %p194, %p195
      %p198 = scmp.ne.s32.totalorder %s181, %s197
      %p199 = scmp.eq.s32.totalorder %s31, 0
      %p200 = por %p198, %p199
      %s201 = ssub.s32 %s33, %s40
      %p202 = scmp.eq.s32.totalorder %s201, 0
      %s204 = sadd.s32 %s203, 1
      %s205 = scalar_select %p202, %s203, %s204
      %p208 = pneg %p202
      %p209 = scmp.eq.s32.totalorder %s25, 3
      %p210 = por %p208, %p209
      %p211 = scmp.ne.s32.totalorder %s203, %s206
      %p212 = scmp.eq.s32.totalorder %s25, 0
      %p213 = por %p211, %p212
      %p214 = scmp.ne.s32.totalorder %s203, %s206
      %p215 = scmp.eq.s32.totalorder %s30, 3
      %p216 = por %p214, %p215
      %p217 = scmp.ne.s32.totalorder %s206, %s207
      %p218 = scmp.eq.s32.totalorder %s30, 0
      %p219 = por %p217, %p218
      %p220 = scmp.ne.s32.totalorder %s206, %s207
      %p221 = scmp.eq.s32.totalorder %s31, 3
      %p222 = por %p220, %p221
      %p224 = scmp.ne.s32.totalorder %s207, %s223
      %p225 = scmp.eq.s32.totalorder %s31, 0
      %p226 = por %p224, %p225
      %s227 = ssub.s32 %s33, %s40
      %p228 = scmp.eq.s32.totalorder %s227, 0
      %s230 = sadd.s32 %s229, 1
      %s231 = scalar_select %p228, %s229, %s230
      %p234 = pneg %p228
      %p235 = scmp.eq.s32.totalorder %s25, 3
      %p236 = por %p234, %p235
      %p237 = scmp.ne.s32.totalorder %s229, %s232
      %p238 = scmp.eq.s32.totalorder %s25, 0
      %p239 = por %p237, %p238
      %p240 = scmp.ne.s32.totalorder %s229, %s232
      %p241 = scmp.eq.s32.totalorder %s30, 3
      %p242 = por %p240, %p241
      %p243 = scmp.ne.s32.totalorder %s232, %s233
      %p244 = scmp.eq.s32.totalorder %s30, 0
      %p245 = por %p243, %p244
      %p246 = scmp.ne.s32.totalorder %s232, %s233
      %p247 = scmp.eq.s32.totalorder %s31, 3
      %p248 = por %p246, %p247
      %p250 = scmp.ne.s32.totalorder %s233, %s249
      %p251 = scmp.eq.s32.totalorder %s31, 0
      %p252 = por %p250, %p251
      %s253 = ssub.s32 %s33, %s40
      %p254 = scmp.eq.s32.totalorder %s253, 0
      %s256 = sadd.s32 %s255, 1
      %s257 = scalar_select %p254, %s255, %s256
      %p260 = pneg %p254
      %p261 = scmp.eq.s32.totalorder %s25, 3
      %p262 = por %p260, %p261
      %p263 = scmp.ne.s32.totalorder %s255, %s258
      %p264 = scmp.eq.s32.totalorder %s25, 0
      %p265 = por %p263, %p264
      %p266 = scmp.ne.s32.totalorder %s255, %s258
      %p267 = scmp.eq.s32.totalorder %s30, 3
      %p268 = por %p266, %p267
      %p269 = scmp.ne.s32.totalorder %s258, %s259
      %p270 = scmp.eq.s32.totalorder %s30, 0
      %p271 = por %p269, %p270
      %p272 = scmp.ne.s32.totalorder %s258, %s259
      %p273 = scmp.eq.s32.totalorder %s31, 3
      %p274 = por %p272, %p273
      %p276 = scmp.ne.s32.totalorder %s259, %s275
      %p277 = scmp.eq.s32.totalorder %s31, 0
      %p278 = por %p276, %p277
      %s279 = ssub.s32 %s33, %s40
      %p280 = scmp.eq.s32.totalorder %s279, 0
      %s282 = sadd.s32 %s281, 1
      %s283 = scalar_select %p280, %s281, %s282
      %p286 = pneg %p280
      %p287 = scmp.eq.s32.totalorder %s25, 3
      %p288 = por %p286, %p287
      %p289 = scmp.ne.s32.totalorder %s281, %s284
      %p290 = scmp.eq.s32.totalorder %s25, 0
      %p291 = por %p289, %p290
      %p292 = scmp.ne.s32.totalorder %s281, %s284
      %p293 = scmp.eq.s32.totalorder %s30, 3
      %p294 = por %p292, %p293
      %p295 = scmp.ne.s32.totalorder %s284, %s285
      %p296 = scmp.eq.s32.totalorder %s30, 0
      %p297 = por %p295, %p296
      %p298 = scmp.ne.s32.totalorder %s284, %s285
      %p299 = scmp.eq.s32.totalorder %s31, 3
      %p300 = por %p298, %p299
      %p302 = scmp.ne.s32.totalorder %s285, %s301
      %p303 = scmp.eq.s32.totalorder %s31, 0
      %p304 = por %p302, %p303
      %s305 = ssub.s32 %s33, %s40
      %p306 = scmp.eq.s32.totalorder %s305, 0
      %s308 = sadd.s32 %s307, 1
      %s309 = scalar_select %p306, %s307, %s308
      %p312 = pneg %p306
      %p313 = scmp.eq.s32.totalorder %s25, 3
      %p314 = por %p312, %p313
      %p315 = scmp.ne.s32.totalorder %s307, %s310
      %p316 = scmp.eq.s32.totalorder %s25, 0
      %p317 = por %p315, %p316
      %p318 = scmp.ne.s32.totalorder %s307, %s310
      %p319 = scmp.eq.s32.totalorder %s30, 3
      %p320 = por %p318, %p319
      %p321 = scmp.ne.s32.totalorder %s310, %s311
      %p322 = scmp.eq.s32.totalorder %s30, 0
      %p323 = por %p321, %p322
      %p324 = scmp.ne.s32.totalorder %s310, %s311
      %p325 = scmp.eq.s32.totalorder %s31, 3
      %p326 = por %p324, %p325
      %p328 = scmp.ne.s32.totalorder %s311, %s327
      %p329 = scmp.eq.s32.totalorder %s31, 0
      %p330 = por %p328, %p329
      %s331 = ssub.s32 %s33, %s40
      %p332 = scmp.eq.s32.totalorder %s331, 0
      %s334 = sadd.s32 %s333, 1
      %s335 = scalar_select %p332, %s333, %s334
      %p338 = pneg %p332
      %p339 = scmp.eq.s32.totalorder %s25, 3
      %p340 = por %p338, %p339
      %p341 = scmp.ne.s32.totalorder %s333, %s336
      %p342 = scmp.eq.s32.totalorder %s25, 0
      %p343 = por %p341, %p342
      %p344 = scmp.ne.s32.totalorder %s333, %s336
      %p345 = scmp.eq.s32.totalorder %s30, 3
      %p346 = por %p344, %p345
      %p347 = scmp.ne.s32.totalorder %s336, %s337
      %p348 = scmp.eq.s32.totalorder %s30, 0
      %p349 = por %p347, %p348
      %p350 = scmp.ne.s32.totalorder %s336, %s337
      %p351 = scmp.eq.s32.totalorder %s31, 3
      %p352 = por %p350, %p351
      %p354 = scmp.ne.s32.totalorder %s337, %s353
      %p355 = scmp.eq.s32.totalorder %s31, 0
      %p356 = por %p354, %p355
      %s357 = ssub.s32 %s33, %s40
      %p358 = scmp.eq.s32.totalorder %s357, 0
      %s360 = sadd.s32 %s359, 1
      %s361 = scalar_select %p358, %s359, %s360
      %p364 = pneg %p358
      %p365 = scmp.eq.s32.totalorder %s25, 3
      %p366 = por %p364, %p365
      %p367 = scmp.ne.s32.totalorder %s359, %s362
      %p368 = scmp.eq.s32.totalorder %s25, 0
      %p369 = por %p367, %p368
      %p370 = scmp.ne.s32.totalorder %s359, %s362
      %p371 = scmp.eq.s32.totalorder %s30, 3
      %p372 = por %p370, %p371
      %p373 = scmp.ne.s32.totalorder %s362, %s363
      %p374 = scmp.eq.s32.totalorder %s30, 0
      %p375 = por %p373, %p374
      %p376 = scmp.ne.s32.totalorder %s362, %s363
      %p377 = scmp.eq.s32.totalorder %s31, 3
      %p378 = por %p376, %p377
      %p380 = scmp.ne.s32.totalorder %s363, %s379
      %p381 = scmp.eq.s32.totalorder %s31, 0
      %p382 = por %p380, %p381
      %s383 = ssub.s32 %s32, %s44
      %p384 = scmp.eq.s32.totalorder %s383, 0
      %s386 = sadd.s32 %s385, 1
      %s387 = scalar_select %p384, %s385, %s386
      %p390 = pneg %p384
      %p391 = scmp.eq.s32.totalorder %s25, 3
      %p392 = por %p390, %p391
      %p393 = scmp.ne.s32.totalorder %s385, %s388
      %p394 = scmp.eq.s32.totalorder %s25, 0
      %p395 = por %p393, %p394
      %p396 = scmp.ne.s32.totalorder %s385, %s388
      %p397 = scmp.eq.s32.totalorder %s30, 3
      %p398 = por %p396, %p397
      %p399 = scmp.ne.s32.totalorder %s388, %s389
      %p400 = scmp.eq.s32.totalorder %s30, 0
      %p401 = por %p399, %p400
      %p402 = scmp.ne.s32.totalorder %s388, %s389
      %p403 = scmp.eq.s32.totalorder %s31, 3
      %p404 = por %p402, %p403
      %p406 = scmp.ne.s32.totalorder %s389, %s405
      %p407 = scmp.eq.s32.totalorder %s31, 0
      %p408 = por %p406, %p407
      %p409 = scmp.le.s32.totalorder 1, %s25
      %p410 = scmp.lt.s32.totalorder %s25, 5
      %p411 = pnand %p409, %p410
      %p412 = pneg %p411
      // Predicated region
      $region9: #{masked_transformer_forward.1} parent=5 // pred_check
        _
      $region10: #{masked_transformer_forward.1} parent=5 // pred_check_branch
        %414 = sbr.rel (%p411) target = $region12
      $region11: #{masked_transformer_forward.1} parent=5 // pred_region
        %s415 = ssub.s32 %s25, 1
      $region12: #{masked_transformer_forward.1} parent=5 // pred_fallthru
        _
      %p416 = scmp.lt.s32.totalorder %s25, 4
      // Predicated region
      $region13: #{masked_transformer_forward.1} parent=5 // pred_check
        %p417 = pneg %p416
      $region14: #{masked_transformer_forward.1} parent=5 // pred_check_branch
        %419 = sbr.rel (%p417) target = $region16
      $region15: #{masked_transformer_forward.1} parent=5 // pred_region
        // Predicated region
        $region17: #{masked_transformer_forward.1} parent=15 // pred_check
          %p420 = pneg %p57
        $region18: #{masked_transformer_forward.1} parent=15 // pred_check_branch
          %422 = sbr.rel (%p420) target = $region20
        $region19: #{masked_transformer_forward.1} parent=15 // pred_region
          %s423 = sand.u32 %s47, 1
          %s424 = scalar_lea.sflag [#allocation4], %s423
          %s425 = sand.u32 %s47, 1
          %s426 = smul.addr %s425, 8
          %s427 = scalar_lea.vmem [#allocation3], %s426
          %s429 = ssub.s32 128, 128
          %430 = vsyncadd %s424, %s429
          %s431 = smul.addr %s32, 128
          %s432 = scalar_lea.hbm %s0, %s431
          %s434 = sshll.u32 %s427, 4
          %s435 = int_to_ptr.vmem [resolvable:$true] %s434
          %437 = dma.hbm_to_vmem [thread:$0]  %s432, 128, %s435, %s424
        $region20: #{masked_transformer_forward.1} parent=15 // pred_fallthru
          _
        // Predicated region
        $region21: #{masked_transformer_forward.1} parent=15 // pred_check
          %p438 = pneg %p83
        $region22: #{masked_transformer_forward.1} parent=15 // pred_check_branch
          %440 = sbr.rel (%p438) target = $region24
        $region23: #{masked_transformer_forward.1} parent=15 // pred_region
          %p441 = scmp.lt.s32.totalorder %s33, 1
          %s442 = scalar_select %p441, %s33, 1
          %s443 = scalar_lea.vmem %s1, %s442
        $region24: #{masked_transformer_forward.1} parent=15 // pred_fallthru
          _
        // Predicated region
        $region25: #{masked_transformer_forward.1} parent=15 // pred_check
          %p444 = pneg %p109
        $region26: #{masked_transformer_forward.1} parent=15 // pred_check_branch
          %446 = sbr.rel (%p444) target = $region28
        $region27: #{masked_transformer_forward.1} parent=15 // pred_region
          %p447 = scmp.lt.s32.totalorder %s33, 1
          %s448 = scalar_select %p447, %s33, 1
          %s449 = scalar_lea.vmem %s2, %s448
        $region28: #{masked_transformer_forward.1} parent=15 // pred_fallthru
          _
        // Predicated region
        $region29: #{masked_transformer_forward.1} parent=15 // pred_check
          %p450 = pneg %p135
        $region30: #{masked_transformer_forward.1} parent=15 // pred_check_branch
          %452 = sbr.rel (%p450) target = $region32
        $region31: #{masked_transformer_forward.1} parent=15 // pred_region
          %p453 = scmp.lt.s32.totalorder %s33, 1
          %s454 = scalar_select %p453, %s33, 1
          %s455 = smul.addr %s454, 4
          %s456 = smul.addr %s455, 4
          %s457 = scalar_lea.vmem %s3, %s456
        $region32: #{masked_transformer_forward.1} parent=15 // pred_fallthru
          _
        // Predicated region
        $region33: #{masked_transformer_forward.1} parent=15 // pred_check
          %p458 = pneg %p161
        $region34: #{masked_transformer_forward.1} parent=15 // pred_check_branch
          %460 = sbr.rel (%p458) target = $region36
        $region35: #{masked_transformer_forward.1} parent=15 // pred_region
          %p461 = scmp.lt.s32.totalorder %s33, 1
          %s462 = scalar_select %p461, %s33, 1
          %s463 = scalar_lea.vmem %s4, %s462
        $region36: #{masked_transformer_forward.1} parent=15 // pred_fallthru
          _
        // Predicated region
        $region37: #{masked_transformer_forward.1} parent=15 // pred_check
          %p464 = pneg %p187
        $region38: #{masked_transformer_forward.1} parent=15 // pred_check_branch
          %466 = sbr.rel (%p464) target = $region40
        $region39: #{masked_transformer_forward.1} parent=15 // pred_region
          %p467 = scmp.lt.s32.totalorder %s33, 1
          %s468 = scalar_select %p467, %s33, 1
          %s469 = smul.addr %s468, 4
          %s470 = smul.addr %s469, 4
          %s471 = scalar_lea.vmem %s5, %s470
        $region40: #{masked_transformer_forward.1} parent=15 // pred_fallthru
          _
        // Predicated region
        $region41: #{masked_transformer_forward.1} parent=15 // pred_check
          %p472 = pneg %p213
        $region42: #{masked_transformer_forward.1} parent=15 // pred_check_branch
          %474 = sbr.rel (%p472) target = $region44
        $region43: #{masked_transformer_forward.1} parent=15 // pred_region
          %p475 = scmp.lt.s32.totalorder %s33, 1
          %s476 = scalar_select %p475, %s33, 1
          %s477 = scalar_lea.vmem %s6, %s476
        $region44: #{masked_transformer_forward.1} parent=15 // pred_fallthru
          _
        // Predicated region
        $region45: #{masked_transformer_forward.1} parent=15 // pred_check
          %p478 = pneg %p239
        $region46: #{masked_transformer_forward.1} parent=15 // pred_check_branch
          %480 = sbr.rel (%p478) target = $region48
        $region47: #{masked_transformer_forward.1} parent=15 // pred_region
          %p481 = scmp.lt.s32.totalorder %s33, 1
          %s482 = scalar_select %p481, %s33, 1
          %s483 = scalar_lea.vmem %s7, %s482
        $region48: #{masked_transformer_forward.1} parent=15 // pred_fallthru
          _
        // Predicated region
        $region49: #{masked_transformer_forward.1} parent=15 // pred_check
          %p484 = pneg %p265
        $region50: #{masked_transformer_forward.1} parent=15 // pred_check_branch
          %486 = sbr.rel (%p484) target = $region52
        $region51: #{masked_transformer_forward.1} parent=15 // pred_region
          %p487 = scmp.lt.s32.totalorder %s33, 1
          %s488 = scalar_select %p487, %s33, 1
          %s489 = scalar_lea.vmem %s8, %s488
        $region52: #{masked_transformer_forward.1} parent=15 // pred_fallthru
          _
        // Predicated region
        $region53: #{masked_transformer_forward.1} parent=15 // pred_check
          %p490 = pneg %p291
        $region54: #{masked_transformer_forward.1} parent=15 // pred_check_branch
          %492 = sbr.rel (%p490) target = $region56
        $region55: #{masked_transformer_forward.1} parent=15 // pred_region
          %p493 = scmp.lt.s32.totalorder %s33, 1
          %s494 = scalar_select %p493, %s33, 1
          %s495 = smul.addr %s494, 4
          %s496 = smul.addr %s495, 4
          %s497 = scalar_lea.vmem %s9, %s496
        $region56: #{masked_transformer_forward.1} parent=15 // pred_fallthru
          _
        // Predicated region
        $region57: #{masked_transformer_forward.1} parent=15 // pred_check
          %p498 = pneg %p317
        $region58: #{masked_transformer_forward.1} parent=15 // pred_check_branch
          %500 = sbr.rel (%p498) target = $region60
        $region59: #{masked_transformer_forward.1} parent=15 // pred_region
          %p501 = scmp.lt.s32.totalorder %s33, 1
          %s502 = scalar_select %p501, %s33, 1
          %s503 = scalar_lea.vmem %s10, %s502
        $region60: #{masked_transformer_forward.1} parent=15 // pred_fallthru
          _
        // Predicated region
        $region61: #{masked_transformer_forward.1} parent=15 // pred_check
          %p504 = pneg %p343
        $region62: #{masked_transformer_forward.1} parent=15 // pred_check_branch
          %506 = sbr.rel (%p504) target = $region64
        $region63: #{masked_transformer_forward.1} parent=15 // pred_region
          %p507 = scmp.lt.s32.totalorder %s33, 1
          %s508 = scalar_select %p507, %s33, 1
          %s509 = smul.addr %s508, 8
          %s510 = smul.addr %s509, 4
          %s511 = scalar_lea.vmem %s11, %s510
        $region64: #{masked_transformer_forward.1} parent=15 // pred_fallthru
          _
        // Predicated region
        $region65: #{masked_transformer_forward.1} parent=15 // pred_check
          %p512 = pneg %p369
        $region66: #{masked_transformer_forward.1} parent=15 // pred_check_branch
          %514 = sbr.rel (%p512) target = $region68
        $region67: #{masked_transformer_forward.1} parent=15 // pred_region
          %p515 = scmp.lt.s32.totalorder %s33, 1
          %s516 = scalar_select %p515, %s33, 1
          %s517 = scalar_lea.vmem %s12, %s516
        $region68: #{masked_transformer_forward.1} parent=15 // pred_fallthru
          _
      $region16: #{masked_transformer_forward.1} parent=5 // pred_fallthru
        _
      %p518 = scmp.le.s32.totalorder 1, %s25
      %p519 = scmp.lt.s32.totalorder %s25, 5
      %p520 = pnand %p518, %p519
      %p521 = pneg %p520
      // Predicated region
      $region69: #{masked_transformer_forward.1} parent=5 // pred_check
        _
      $region70: #{masked_transformer_forward.1} parent=5 // pred_check_branch
        %523 = sbr.rel (%p520) target = $region72
      $region71: #{masked_transformer_forward.1} parent=5 // pred_region
        %s524 = ssub.s32 %s25, 1
        %s525 = sand.u32 %s50, 1
        %s526 = scalar_lea.sflag [#allocation4], %s525
        %s527 = sand.u32 %s50, 1
        %s528 = smul.addr %s527, 8
        %s529 = scalar_lea.vmem [#allocation3], %s528
        // Predicated region
        $region73: #{masked_transformer_forward.1} parent=71 // pred_check
          %p530 = pneg %p63
        $region74: #{masked_transformer_forward.1} parent=71 // pred_check_branch
          %532 = sbr.rel (%p530) target = $region76
        $region75: #{masked_transformer_forward.1} parent=71 // pred_region
          %533 = dma.done %s526, 128
        $region76: #{masked_transformer_forward.1} parent=71 // pred_fallthru
          _
        %s534 = sand.u32 %s50, 1
        %s535 = scalar_lea.sflag [#allocation4], %s534
        %s536 = sand.u32 %s50, 1
        %s537 = smul.addr %s536, 8
        %s538 = scalar_lea.vmem [#allocation3], %s537
        %p539 = pneg %p63
        %p540 = pneg %p60
        %p541 = scmp.lt.s32.totalorder %s35, 1
        %s542 = scalar_select %p541, %s35, 1
        %s543 = scalar_lea.vmem %s1, %s542
        %p544 = pneg %p89
        %p545 = pneg %p86
        %p546 = scmp.lt.s32.totalorder %s35, 1
        %s547 = scalar_select %p546, %s35, 1
        %s548 = scalar_lea.vmem %s2, %s547
        %p549 = pneg %p115
        %p550 = pneg %p112
        %p551 = scmp.lt.s32.totalorder %s35, 1
        %s552 = scalar_select %p551, %s35, 1
        %s553 = smul.addr %s552, 4
        %s554 = smul.addr %s553, 4
        %s555 = scalar_lea.vmem %s3, %s554
        %p556 = pneg %p141
        %p557 = pneg %p138
        %p558 = scmp.lt.s32.totalorder %s35, 1
        %s559 = scalar_select %p558, %s35, 1
        %s560 = scalar_lea.vmem %s4, %s559
        %p561 = pneg %p167
        %p562 = pneg %p164
        %p563 = scmp.lt.s32.totalorder %s35, 1
        %s564 = scalar_select %p563, %s35, 1
        %s565 = smul.addr %s564, 4
        %s566 = smul.addr %s565, 4
        %s567 = scalar_lea.vmem %s5, %s566
        %p568 = pneg %p193
        %p569 = pneg %p190
        %p570 = scmp.lt.s32.totalorder %s35, 1
        %s571 = scalar_select %p570, %s35, 1
        %s572 = scalar_lea.vmem %s6, %s571
        %p573 = pneg %p219
        %p574 = pneg %p216
        %p575 = scmp.lt.s32.totalorder %s35, 1
        %s576 = scalar_select %p575, %s35, 1
        %s577 = scalar_lea.vmem %s7, %s576
        %p578 = pneg %p245
        %p579 = pneg %p242
        %p580 = scmp.lt.s32.totalorder %s35, 1
        %s581 = scalar_select %p580, %s35, 1
        %s582 = scalar_lea.vmem %s8, %s581
        %p583 = pneg %p271
        %p584 = pneg %p268
        %p585 = scmp.lt.s32.totalorder %s35, 1
        %s586 = scalar_select %p585, %s35, 1
        %s587 = smul.addr %s586, 4
        %s588 = smul.addr %s587, 4
        %s589 = scalar_lea.vmem %s9, %s588
        %p590 = pneg %p297
        %p591 = pneg %p294
        %p592 = scmp.lt.s32.totalorder %s35, 1
        %s593 = scalar_select %p592, %s35, 1
        %s594 = scalar_lea.vmem %s10, %s593
        %p595 = pneg %p323
        %p596 = pneg %p320
        %p597 = scmp.lt.s32.totalorder %s35, 1
        %s598 = scalar_select %p597, %s35, 1
        %s599 = smul.addr %s598, 8
        %s600 = smul.addr %s599, 4
        %s601 = scalar_lea.vmem %s11, %s600
        %p602 = pneg %p349
        %p603 = pneg %p346
        %p604 = scmp.lt.s32.totalorder %s35, 1
        %s605 = scalar_select %p604, %s35, 1
        %s606 = scalar_lea.vmem %s12, %s605
        %p607 = pneg %p375
        %p608 = pneg %p372
        %p609 = pneg %p401
        %p610 = pneg %p398
        %s611 = sand.u32 %s388, 1
        %s612 = scalar_lea.sflag [#allocation5], %s611
        %s613 = sand.u32 %s388, 1
        %s614 = smul.addr %s613, 8
        %s615 = scalar_lea.vmem [#allocation6], %s614
        %p616 = scmp.lt.s32.totalorder %s35, 1
        %s617 = scalar_select %p616, %s35, 1
        %s618 = scalar_lea.vmem %s1, %s617
        %p619 = scmp.lt.s32.totalorder %s35, 1
        %s620 = scalar_select %p619, %s35, 1
        %s621 = scalar_lea.vmem %s2, %s620
        %p622 = scmp.lt.s32.totalorder %s35, 1
        %s623 = scalar_select %p622, %s35, 1
        %s624 = smul.addr %s623, 4
        %s625 = smul.addr %s624, 4
        %s626 = scalar_lea.vmem %s3, %s625
        %p627 = scmp.lt.s32.totalorder %s35, 1
        %s628 = scalar_select %p627, %s35, 1
        %s629 = scalar_lea.vmem %s4, %s628
        %p630 = scmp.lt.s32.totalorder %s35, 1
        %s631 = scalar_select %p630, %s35, 1
        %s632 = smul.addr %s631, 4
        %s633 = smul.addr %s632, 4
        %s634 = scalar_lea.vmem %s5, %s633
        %p635 = scmp.lt.s32.totalorder %s35, 1
        %s636 = scalar_select %p635, %s35, 1
        %s637 = scalar_lea.vmem %s6, %s636
        %p638 = scmp.lt.s32.totalorder %s35, 1
        %s639 = scalar_select %p638, %s35, 1
        %s640 = scalar_lea.vmem %s7, %s639
        %p641 = scmp.lt.s32.totalorder %s35, 1
        %s642 = scalar_select %p641, %s35, 1
        %s643 = scalar_lea.vmem %s8, %s642
        %p644 = scmp.lt.s32.totalorder %s35, 1
        %s645 = scalar_select %p644, %s35, 1
        %s646 = smul.addr %s645, 4
        %s647 = smul.addr %s646, 4
        %s648 = scalar_lea.vmem %s9, %s647
        %p649 = scmp.lt.s32.totalorder %s35, 1
        %s650 = scalar_select %p649, %s35, 1
        %s651 = scalar_lea.vmem %s10, %s650
        %p652 = scmp.lt.s32.totalorder %s35, 1
        %s653 = scalar_select %p652, %s35, 1
        %s654 = smul.addr %s653, 8
        %s655 = smul.addr %s654, 4
        %s656 = scalar_lea.vmem %s11, %s655
        %p657 = scmp.lt.s32.totalorder %s35, 1
        %s658 = scalar_select %p657, %s35, 1
        %s659 = scalar_lea.vmem %s12, %s658
        %p661 = scmp.eq.s32.totalorder %s35, 0
        // Predicated region
        $region77: #{masked_transformer_forward.1} parent=71 // pred_check
          %p662 = pneg %p661
        $region78: #{masked_transformer_forward.1} parent=71 // pred_check_branch
          %664 = sbr.rel (%p662) target = $region80
        $region79: #{masked_transformer_forward.1} parent=71 // pred_region
          %v665 = vld [vmem:[%s529] sm:$0xff]
          %vm666 = vcmask 261120
          %667 = vst.msk [vmem:[#allocation2] sm:$0xff] %vm666, %v665
        $region80: #{masked_transformer_forward.1} parent=71 // pred_fallthru
          _
        %v668 = vld [vmem:[#allocation2] sm:$0xff]
        %v669 = vld [vmem:[%s618] sm:$0x1]
        %v670 = vld [vmem:[%s621] sm:$0x1]
        %vm671 = vcmask 261120
        %v672 = vsel %vm671, %v668, 0.0
        %673 = vadd.xlane.f32.xlu0 %v672
        %v674 = vpop.xlane.xlu0 %673
        %v675 = vrcp.pop 32.0
        %v676 = vmul.f32 %v674, %v675
        %v677 = vsub.f32 %v668, %v676
        %v678 = vmul.f32 %v677, %v677
        %v679 = vsel %vm671, %v678, 0.0
        %680 = vadd.xlane.f32.xlu0 %v679
        %v681 = vpop.xlane.xlu0 %680
        %v682 = vmul.f32 %v681, %v675
        %v683 = vadd.f32 %v682, 1e-05
        %v684 = vrsqrt.pop %v683
        %v685 = vmul.f32 %v677, %v684
        %v687 = vlaneseq
        %v688 = vshrl.u32 %v687, 7
        %v689 = vsub.s32 0, %v688
        %v690 = vrot.slane %v669, %v689
        %v692 = vmul.f32 %v685, %v690
        %v694 = vlaneseq
        %v695 = vshrl.u32 %v694, 7
        %v696 = vsub.s32 0, %v695
        %v697 = vrot.slane %v670, %v696
        %v699 = vadd.f32 %v692, %v697
        %v700 = vpack.c.bf16 %v699, %v699
        %v701 = vld [vmem:[%s626] sm:$0xf]
        %v702 = vld [vmem:[%s626 + $0x4] sm:$0xf]
        %v703 = vld [vmem:[%s626 + $0x8] sm:$0xf]
        %v704 = vld [vmem:[%s626 + $0xc] sm:$0xf]
        %v705 = vld [vmem:[%s629] sm:$0x1]
        %v707 = vlaneseq
        %v708 = vshrl.u32 %v707, 7
        %v709 = vsub.s32 0, %v708
        %v710 = vrot.slane %v705, %v709
        %v716 = vunpack.c.l.b16 %v701
        %v717 = vunpack.c.l.b16 %v702
        %v718 = vunpack.c.l.b16 %v703
        %v719 = vunpack.c.l.b16 %v704
        %v720 = vpack.c.b16 %v717, %v716
        %v721 = vpack.c.b16 %v719, %v718
        %v725 = vsel %vm671, %v700, 0
        %727 = vmatprep.subr.bf16.mxu0 0
        %728 = vmatpush1.bf16.msra.mxu0 %v720
        %729 = vmatprep.subr.bf16.mxu0 0
        %730 = vmatpush1.bf16.msra.mxu0 %v721
        %731 = vmatprep.subr.bf16.mxu0 0
        %732 = vmatpush1.bf16.msra.mxu0 0
        %733 = vmatprep.subr.bf16.mxu0 0
        %734 = vmatpush1.bf16.msra.mxu0 0
        %735 = vmatprep.subr.bf16.mxu0 0
        %736 = vmatpush1.bf16.msra.mxu0 0
        %737 = vmatprep.subr.bf16.mxu0 0
        %738 = vmatpush1.bf16.msra.mxu0 0
        %739 = vmatprep.subr.bf16.mxu0 0
        %740 = vmatpush1.bf16.msra.mxu0 0
        %741 = vmatprep.subr.bf16.mxu0 0
        %742 = vmatpush1.bf16.msra.mxu0 0
        %743 = vmatprep.subr.bf16.mxu0 0
        %744 = vmatpush1.bf16.msra.mxu0 0
        %745 = vmatprep.subr.bf16.mxu0 0
        %746 = vmatpush1.bf16.msra.mxu0 0
        %747 = vmatprep.subr.bf16.mxu0 0
        %748 = vmatpush1.bf16.msra.mxu0 0
        %749 = vmatprep.subr.bf16.mxu0 0
        %750 = vmatpush1.bf16.msra.mxu0 0
        %751 = vmatprep.subr.bf16.mxu0 0
        %752 = vmatpush1.bf16.msra.mxu0 0
        %753 = vmatprep.subr.bf16.mxu0 0
        %754 = vmatpush1.bf16.msra.mxu0 0
        %755 = vmatprep.subr.bf16.mxu0 0
        %756 = vmatpush1.bf16.msra.mxu0 0
        %757 = vmatprep.subr.bf16.mxu0 0
        %758 = vmatpush1.bf16.msra.mxu0 0
        %759 = vmatprep.mubr.bf16.mxu0 0
        %760 = vmatmul.mubr.bf16.gmra.mrb[0].mxu0 %v725
        %v761 = vpop.f32.mrb[0].mxu0
        %v762 = vadd.f32 %v710, %v761
        %v763 = vpop.f32.mrb[0].mxu0
        %v764 = vpop.f32.mrb[0].mxu0
        %v765 = vpop.f32.mrb[0].mxu0
        %766 = vdwg.mxu0
        %767 = vxpose.xlu0.b32.start [1/16] %v762, 128
        %768 = vxpose.xlu0.b32.cont [2/16] 0.0, 128
        %769 = vxpose.xlu0.b32.cont [3/16] 0.0, 128
        %770 = vxpose.xlu0.b32.cont [4/16] 0.0, 128
        %771 = vxpose.xlu0.b32.cont [5/16] 0.0, 128
        %772 = vxpose.xlu0.b32.cont [6/16] 0.0, 128
        %773 = vxpose.xlu0.b32.cont [7/16] 0.0, 128
        %774 = vxpose.xlu0.b32.cont [8/16] 0.0, 128
        %775 = vxpose.xlu0.b32.cont [9/16] 0.0, 128
        %776 = vxpose.xlu0.b32.cont [10/16] 0.0, 128
        %777 = vxpose.xlu0.b32.cont [11/16] 0.0, 128
        %778 = vxpose.xlu0.b32.cont [12/16] 0.0, 128
        %779 = vxpose.xlu0.b32.cont [13/16] 0.0, 128
        %780 = vxpose.xlu0.b32.cont [14/16] 0.0, 128
        %781 = vxpose.xlu0.b32.cont [15/16] 0.0, 128
        %782 = vxpose.xlu0.b32.end [16/16] 0.0, 128
        %v783 = vpop.trf.xlu0
        %v784 = vpop.trf.xlu0
        %v785 = vpop.trf.xlu0
        %v786 = vpop.trf.xlu0
        %v787 = vpop.trf.xlu0
        %v788 = vpop.trf.xlu0
        %v789 = vpop.trf.xlu0
        %v790 = vpop.trf.xlu0
        %v791 = vpop.trf.xlu0
        %v792 = vpop.trf.xlu0
        %v793 = vpop.trf.xlu0
        %v794 = vpop.trf.xlu0
        %v795 = vpop.trf.xlu0
        %v796 = vpop.trf.xlu0
        %v797 = vpop.trf.xlu0
        %v798 = vpop.trf.xlu0
        %799 = vxpose.xlu0.b32.start [1/16] %v783, 128
        %800 = vxpose.xlu0.b32.cont [2/16] 0.0, 128
        %801 = vxpose.xlu0.b32.cont [3/16] 0.0, 128
        %802 = vxpose.xlu0.b32.cont [4/16] 0.0, 128
        %803 = vxpose.xlu0.b32.cont [5/16] 0.0, 128
        %804 = vxpose.xlu0.b32.cont [6/16] 0.0, 128
        %805 = vxpose.xlu0.b32.cont [7/16] 0.0, 128
        %806 = vxpose.xlu0.b32.cont [8/16] 0.0, 128
        %807 = vxpose.xlu0.b32.cont [9/16] 0.0, 128
        %808 = vxpose.xlu0.b32.cont [10/16] 0.0, 128
        %809 = vxpose.xlu0.b32.cont [11/16] 0.0, 128
        %810 = vxpose.xlu0.b32.cont [12/16] 0.0, 128
        %811 = vxpose.xlu0.b32.cont [13/16] 0.0, 128
        %812 = vxpose.xlu0.b32.cont [14/16] 0.0, 128
        %813 = vxpose.xlu0.b32.cont [15/16] 0.0, 128
        %814 = vxpose.xlu0.b32.end [16/16] 0.0, 128
        %v815 = vpop.trf.xlu0
        %v816 = vpop.trf.xlu0
        %v817 = vpop.trf.xlu0
        %v818 = vpop.trf.xlu0
        %v819 = vpop.trf.xlu0
        %v820 = vpop.trf.xlu0
        %v821 = vpop.trf.xlu0
        %v822 = vpop.trf.xlu0
        %v823 = vpop.trf.xlu0
        %v824 = vpop.trf.xlu0
        %v825 = vpop.trf.xlu0
        %v826 = vpop.trf.xlu0
        %v827 = vpop.trf.xlu0
        %v828 = vpop.trf.xlu0
        %v829 = vpop.trf.xlu0
        %v830 = vpop.trf.xlu0
        %831 = vxpose.xlu0.b32.start [1/16] %v784, 128
        %832 = vxpose.xlu0.b32.cont [2/16] 0.0, 128
        %833 = vxpose.xlu0.b32.cont [3/16] 0.0, 128
        %834 = vxpose.xlu0.b32.cont [4/16] 0.0, 128
        %835 = vxpose.xlu0.b32.cont [5/16] 0.0, 128
        %836 = vxpose.xlu0.b32.cont [6/16] 0.0, 128
        %837 = vxpose.xlu0.b32.cont [7/16] 0.0, 128
        %838 = vxpose.xlu0.b32.cont [8/16] 0.0, 128
        %839 = vxpose.xlu0.b32.cont [9/16] 0.0, 128
        %840 = vxpose.xlu0.b32.cont [10/16] 0.0, 128
        %841 = vxpose.xlu0.b32.cont [11/16] 0.0, 128
        %842 = vxpose.xlu0.b32.cont [12/16] 0.0, 128
        %843 = vxpose.xlu0.b32.cont [13/16] 0.0, 128
        %844 = vxpose.xlu0.b32.cont [14/16] 0.0, 128
        %845 = vxpose.xlu0.b32.cont [15/16] 0.0, 128
        %846 = vxpose.xlu0.b32.end [16/16] 0.0, 128
        %v847 = vpop.trf.xlu0
        %v848 = vpop.trf.xlu0
        %v849 = vpop.trf.xlu0
        %v850 = vpop.trf.xlu0
        %v851 = vpop.trf.xlu0
        %v852 = vpop.trf.xlu0
        %v853 = vpop.trf.xlu0
        %v854 = vpop.trf.xlu0
        %v855 = vpop.trf.xlu0
        %v856 = vpop.trf.xlu0
        %v857 = vpop.trf.xlu0
        %v858 = vpop.trf.xlu0
        %v859 = vpop.trf.xlu0
        %v860 = vpop.trf.xlu0
        %v861 = vpop.trf.xlu0
        %v862 = vpop.trf.xlu0
        %863 = vxpose.xlu0.b32.start [1/16] %v785, 128
        %864 = vxpose.xlu0.b32.cont [2/16] 0.0, 128
        %865 = vxpose.xlu0.b32.cont [3/16] 0.0, 128
        %866 = vxpose.xlu0.b32.cont [4/16] 0.0, 128
        %867 = vxpose.xlu0.b32.cont [5/16] 0.0, 128
        %868 = vxpose.xlu0.b32.cont [6/16] 0.0, 128
        %869 = vxpose.xlu0.b32.cont [7/16] 0.0, 128
        %870 = vxpose.xlu0.b32.cont [8/16] 0.0, 128
        %871 = vxpose.xlu0.b32.cont [9/16] 0.0, 128
        %872 = vxpose.xlu0.b32.cont [10/16] 0.0, 128
        %873 = vxpose.xlu0.b32.cont [11/16] 0.0, 128
        %874 = vxpose.xlu0.b32.cont [12/16] 0.0, 128
        %875 = vxpose.xlu0.b32.cont [13/16] 0.0, 128
        %876 = vxpose.xlu0.b32.cont [14/16] 0.0, 128
        %877 = vxpose.xlu0.b32.cont [15/16] 0.0, 128
        %878 = vxpose.xlu0.b32.end [16/16] 0.0, 128
        %v879 = vpop.trf.xlu0
        %v880 = vpop.trf.xlu0
        %v881 = vpop.trf.xlu0
        %v882 = vpop.trf.xlu0
        %v883 = vpop.trf.xlu0
        %v884 = vpop.trf.xlu0
        %v885 = vpop.trf.xlu0
        %v886 = vpop.trf.xlu0
        %v887 = vpop.trf.xlu0
        %v888 = vpop.trf.xlu0
        %v889 = vpop.trf.xlu0
        %v890 = vpop.trf.xlu0
        %v891 = vpop.trf.xlu0
        %v892 = vpop.trf.xlu0
        %v893 = vpop.trf.xlu0
        %v894 = vpop.trf.xlu0
        %895 = vxpose.xlu0.b32.start [1/16] %v786, 128
        %896 = vxpose.xlu0.b32.cont [2/16] 0.0, 128
        %897 = vxpose.xlu0.b32.cont [3/16] 0.0, 128
        %898 = vxpose.xlu0.b32.cont [4/16] 0.0, 128
        %899 = vxpose.xlu0.b32.cont [5/16] 0.0, 128
        %900 = vxpose.xlu0.b32.cont [6/16] 0.0, 128
        %901 = vxpose.xlu0.b32.cont [7/16] 0.0, 128
        %902 = vxpose.xlu0.b32.cont [8/16] 0.0, 128
        %903 = vxpose.xlu0.b32.cont [9/16] 0.0, 128
        %904 = vxpose.xlu0.b32.cont [10/16] 0.0, 128
        %905 = vxpose.xlu0.b32.cont [11/16] 0.0, 128
        %906 = vxpose.xlu0.b32.cont [12/16] 0.0, 128
        %907 = vxpose.xlu0.b32.cont [13/16] 0.0, 128
        %908 = vxpose.xlu0.b32.cont [14/16] 0.0, 128
        %909 = vxpose.xlu0.b32.cont [15/16] 0.0, 128
        %910 = vxpose.xlu0.b32.end [16/16] 0.0, 128
        %v911 = vpop.trf.xlu0
        %v912 = vpop.trf.xlu0
        %v913 = vpop.trf.xlu0
        %v914 = vpop.trf.xlu0
        %v915 = vpop.trf.xlu0
        %v916 = vpop.trf.xlu0
        %v917 = vpop.trf.xlu0
        %v918 = vpop.trf.xlu0
        %v919 = vpop.trf.xlu0
        %v920 = vpop.trf.xlu0
        %v921 = vpop.trf.xlu0
        %v922 = vpop.trf.xlu0
        %v923 = vpop.trf.xlu0
        %v924 = vpop.trf.xlu0
        %v925 = vpop.trf.xlu0
        %v926 = vpop.trf.xlu0
        %v927 = vmul.f32 %v815, 0.35355338
        %v928 = vmul.f32 %v847, 0.35355338
        %v929 = vmul.f32 %v879, 0.35355338
        %v930 = vmul.f32 %v911, 0.35355338
        %932 = vrot.lane.b32.xlu0 %v762, 96
        %v933 = vpop.permute.xlu0 %932
        %935 = vxpose.xlu0.b32.start [1/16] %v933, 128
        %936 = vxpose.xlu0.b32.cont [2/16] 0.0, 128
        %937 = vxpose.xlu0.b32.cont [3/16] 0.0, 128
        %938 = vxpose.xlu0.b32.cont [4/16] 0.0, 128
        %939 = vxpose.xlu0.b32.cont [5/16] 0.0, 128
        %940 = vxpose.xlu0.b32.cont [6/16] 0.0, 128
        %941 = vxpose.xlu0.b32.cont [7/16] 0.0, 128
        %942 = vxpose.xlu0.b32.cont [8/16] 0.0, 128
        %943 = vxpose.xlu0.b32.cont [9/16] 0.0, 128
        %944 = vxpose.xlu0.b32.cont [10/16] 0.0, 128
        %945 = vxpose.xlu0.b32.cont [11/16] 0.0, 128
        %946 = vxpose.xlu0.b32.cont [12/16] 0.0, 128
        %947 = vxpose.xlu0.b32.cont [13/16] 0.0, 128
        %948 = vxpose.xlu0.b32.cont [14/16] 0.0, 128
        %949 = vxpose.xlu0.b32.cont [15/16] 0.0, 128
        %950 = vxpose.xlu0.b32.end [16/16] 0.0, 128
        %v951 = vpop.trf.xlu0
        %v952 = vpop.trf.xlu0
        %v953 = vpop.trf.xlu0
        %v954 = vpop.trf.xlu0
        %v955 = vpop.trf.xlu0
        %v956 = vpop.trf.xlu0
        %v957 = vpop.trf.xlu0
        %v958 = vpop.trf.xlu0
        %v959 = vpop.trf.xlu0
        %v960 = vpop.trf.xlu0
        %v961 = vpop.trf.xlu0
        %v962 = vpop.trf.xlu0
        %v963 = vpop.trf.xlu0
        %v964 = vpop.trf.xlu0
        %v965 = vpop.trf.xlu0
        %v966 = vpop.trf.xlu0
        %967 = vxpose.xlu0.b32.start [1/16] %v951, 128
        %968 = vxpose.xlu0.b32.cont [2/16] 0.0, 128
        %969 = vxpose.xlu0.b32.cont [3/16] 0.0, 128
        %970 = vxpose.xlu0.b32.cont [4/16] 0.0, 128
        %971 = vxpose.xlu0.b32.cont [5/16] 0.0, 128
        %972 = vxpose.xlu0.b32.cont [6/16] 0.0, 128
        %973 = vxpose.xlu0.b32.cont [7/16] 0.0, 128
        %974 = vxpose.xlu0.b32.cont [8/16] 0.0, 128
        %975 = vxpose.xlu0.b32.cont [9/16] 0.0, 128
        %976 = vxpose.xlu0.b32.cont [10/16] 0.0, 128
        %977 = vxpose.xlu0.b32.cont [11/16] 0.0, 128
        %978 = vxpose.xlu0.b32.cont [12/16] 0.0, 128
        %979 = vxpose.xlu0.b32.cont [13/16] 0.0, 128
        %980 = vxpose.xlu0.b32.cont [14/16] 0.0, 128
        %981 = vxpose.xlu0.b32.cont [15/16] 0.0, 128
        %982 = vxpose.xlu0.b32.end [16/16] 0.0, 128
        %v983 = vpop.trf.xlu0
        %v984 = vpop.trf.xlu0
        %v985 = vpop.trf.xlu0
        %v986 = vpop.trf.xlu0
        %v987 = vpop.trf.xlu0
        %v988 = vpop.trf.xlu0
        %v989 = vpop.trf.xlu0
        %v990 = vpop.trf.xlu0
        %v991 = vpop.trf.xlu0
        %v992 = vpop.trf.xlu0
        %v993 = vpop.trf.xlu0
        %v994 = vpop.trf.xlu0
        %v995 = vpop.trf.xlu0
        %v996 = vpop.trf.xlu0
        %v997 = vpop.trf.xlu0
        %v998 = vpop.trf.xlu0
        %999 = vxpose.xlu0.b32.start [1/16] %v952, 128
        %1000 = vxpose.xlu0.b32.cont [2/16] 0.0, 128
        %1001 = vxpose.xlu0.b32.cont [3/16] 0.0, 128
        %1002 = vxpose.xlu0.b32.cont [4/16] 0.0, 128
        %1003 = vxpose.xlu0.b32.cont [5/16] 0.0, 128
        %1004 = vxpose.xlu0.b32.cont [6/16] 0.0, 128
        %1005 = vxpose.xlu0.b32.cont [7/16] 0.0, 128
        %1006 = vxpose.xlu0.b32.cont [8/16] 0.0, 128
        %1007 = vxpose.xlu0.b32.cont [9/16] 0.0, 128
        %1008 = vxpose.xlu0.b32.cont [10/16] 0.0, 128
        %1009 = vxpose.xlu0.b32.cont [11/16] 0.0, 128
        %1010 = vxpose.xlu0.b32.cont [12/16] 0.0, 128
        %1011 = vxpose.xlu0.b32.cont [13/16] 0.0, 128
        %1012 = vxpose.xlu0.b32.cont [14/16] 0.0, 128
        %1013 = vxpose.xlu0.b32.cont [15/16] 0.0, 128
        %1014 = vxpose.xlu0.b32.end [16/16] 0.0, 128
        %v1015 = vpop.trf.xlu0
        %v1016 = vpop.trf.xlu0
        %v1017 = vpop.trf.xlu0
        %v1018 = vpop.trf.xlu0
        %v1019 = vpop.trf.xlu0
        %v1020 = vpop.trf.xlu0
        %v1021 = vpop.trf.xlu0
        %v1022 = vpop.trf.xlu0
        %v1023 = vpop.trf.xlu0
        %v1024 = vpop.trf.xlu0
        %v1025 = vpop.trf.xlu0
        %v1026 = vpop.trf.xlu0
        %v1027 = vpop.trf.xlu0
        %v1028 = vpop.trf.xlu0
        %v1029 = vpop.trf.xlu0
        %v1030 = vpop.trf.xlu0
        %1031 = vxpose.xlu0.b32.start [1/16] %v953, 128
        %1032 = vxpose.xlu0.b32.cont [2/16] 0.0, 128
        %1033 = vxpose.xlu0.b32.cont [3/16] 0.0, 128
        %1034 = vxpose.xlu0.b32.cont [4/16] 0.0, 128
        %1035 = vxpose.xlu0.b32.cont [5/16] 0.0, 128
        %1036 = vxpose.xlu0.b32.cont [6/16] 0.0, 128
        %1037 = vxpose.xlu0.b32.cont [7/16] 0.0, 128
        %1038 = vxpose.xlu0.b32.cont [8/16] 0.0, 128
        %1039 = vxpose.xlu0.b32.cont [9/16] 0.0, 128
        %1040 = vxpose.xlu0.b32.cont [10/16] 0.0, 128
        %1041 = vxpose.xlu0.b32.cont [11/16] 0.0, 128
        %1042 = vxpose.xlu0.b32.cont [12/16] 0.0, 128
        %1043 = vxpose.xlu0.b32.cont [13/16] 0.0, 128
        %1044 = vxpose.xlu0.b32.cont [14/16] 0.0, 128
        %1045 = vxpose.xlu0.b32.cont [15/16] 0.0, 128
        %1046 = vxpose.xlu0.b32.end [16/16] 0.0, 128
        %v1047 = vpop.trf.xlu0
        %v1048 = vpop.trf.xlu0
        %v1049 = vpop.trf.xlu0
        %v1050 = vpop.trf.xlu0
        %v1051 = vpop.trf.xlu0
        %v1052 = vpop.trf.xlu0
        %v1053 = vpop.trf.xlu0
        %v1054 = vpop.trf.xlu0
        %v1055 = vpop.trf.xlu0
        %v1056 = vpop.trf.xlu0
        %v1057 = vpop.trf.xlu0
        %v1058 = vpop.trf.xlu0
        %v1059 = vpop.trf.xlu0
        %v1060 = vpop.trf.xlu0
        %v1061 = vpop.trf.xlu0
        %v1062 = vpop.trf.xlu0
        %1063 = vxpose.xlu0.b32.start [1/16] %v954, 128
        %1064 = vxpose.xlu0.b32.cont [2/16] 0.0, 128
        %1065 = vxpose.xlu0.b32.cont [3/16] 0.0, 128
        %1066 = vxpose.xlu0.b32.cont [4/16] 0.0, 128
        %1067 = vxpose.xlu0.b32.cont [5/16] 0.0, 128
        %1068 = vxpose.xlu0.b32.cont [6/16] 0.0, 128
        %1069 = vxpose.xlu0.b32.cont [7/16] 0.0, 128
        %1070 = vxpose.xlu0.b32.cont [8/16] 0.0, 128
        %1071 = vxpose.xlu0.b32.cont [9/16] 0.0, 128
        %1072 = vxpose.xlu0.b32.cont [10/16] 0.0, 128
        %1073 = vxpose.xlu0.b32.cont [11/16] 0.0, 128
        %1074 = vxpose.xlu0.b32.cont [12/16] 0.0, 128
        %1075 = vxpose.xlu0.b32.cont [13/16] 0.0, 128
        %1076 = vxpose.xlu0.b32.cont [14/16] 0.0, 128
        %1077 = vxpose.xlu0.b32.cont [15/16] 0.0, 128
        %1078 = vxpose.xlu0.b32.end [16/16] 0.0, 128
        %v1079 = vpop.trf.xlu0
        %v1080 = vpop.trf.xlu0
        %v1081 = vpop.trf.xlu0
        %v1082 = vpop.trf.xlu0
        %v1083 = vpop.trf.xlu0
        %v1084 = vpop.trf.xlu0
        %v1085 = vpop.trf.xlu0
        %v1086 = vpop.trf.xlu0
        %v1087 = vpop.trf.xlu0
        %v1088 = vpop.trf.xlu0
        %v1089 = vpop.trf.xlu0
        %v1090 = vpop.trf.xlu0
        %v1091 = vpop.trf.xlu0
        %v1092 = vpop.trf.xlu0
        %v1093 = vpop.trf.xlu0
        %v1094 = vpop.trf.xlu0
        %1095 = vrot.lane.b32.xlu0 %v762, 64
        %v1096 = vpop.permute.xlu0 %1095
        %1098 = vxpose.xlu0.b32.start [1/16] %v1096, 128
        %1099 = vxpose.xlu0.b32.cont [2/16] 0.0, 128
        %1100 = vxpose.xlu0.b32.cont [3/16] 0.0, 128
        %1101 = vxpose.xlu0.b32.cont [4/16] 0.0, 128
        %1102 = vxpose.xlu0.b32.cont [5/16] 0.0, 128
        %1103 = vxpose.xlu0.b32.cont [6/16] 0.0, 128
        %1104 = vxpose.xlu0.b32.cont [7/16] 0.0, 128
        %1105 = vxpose.xlu0.b32.cont [8/16] 0.0, 128
        %1106 = vxpose.xlu0.b32.cont [9/16] 0.0, 128
        %1107 = vxpose.xlu0.b32.cont [10/16] 0.0, 128
        %1108 = vxpose.xlu0.b32.cont [11/16] 0.0, 128
        %1109 = vxpose.xlu0.b32.cont [12/16] 0.0, 128
        %1110 = vxpose.xlu0.b32.cont [13/16] 0.0, 128
        %1111 = vxpose.xlu0.b32.cont [14/16] 0.0, 128
        %1112 = vxpose.xlu0.b32.cont [15/16] 0.0, 128
        %1113 = vxpose.xlu0.b32.end [16/16] 0.0, 128
        %v1114 = vpop.trf.xlu0
        %v1115 = vpop.trf.xlu0
        %v1116 = vpop.trf.xlu0
        %v1117 = vpop.trf.xlu0
        %v1118 = vpop.trf.xlu0
        %v1119 = vpop.trf.xlu0
        %v1120 = vpop.trf.xlu0
        %v1121 = vpop.trf.xlu0
        %v1122 = vpop.trf.xlu0
        %v1123 = vpop.trf.xlu0
        %v1124 = vpop.trf.xlu0
        %v1125 = vpop.trf.xlu0
        %v1126 = vpop.trf.xlu0
        %v1127 = vpop.trf.xlu0
        %v1128 = vpop.trf.xlu0
        %v1129 = vpop.trf.xlu0
        %1130 = vxpose.xlu0.b32.start [1/16] %v1114, 128
        %1131 = vxpose.xlu0.b32.cont [2/16] 0.0, 128
        %1132 = vxpose.xlu0.b32.cont [3/16] 0.0, 128
        %1133 = vxpose.xlu0.b32.cont [4/16] 0.0, 128
        %1134 = vxpose.xlu0.b32.cont [5/16] 0.0, 128
        %1135 = vxpose.xlu0.b32.cont [6/16] 0.0, 128
        %1136 = vxpose.xlu0.b32.cont [7/16] 0.0, 128
        %1137 = vxpose.xlu0.b32.cont [8/16] 0.0, 128
        %1138 = vxpose.xlu0.b32.cont [9/16] 0.0, 128
        %1139 = vxpose.xlu0.b32.cont [10/16] 0.0, 128
        %1140 = vxpose.xlu0.b32.cont [11/16] 0.0, 128
        %1141 = vxpose.xlu0.b32.cont [12/16] 0.0, 128
        %1142 = vxpose.xlu0.b32.cont [13/16] 0.0, 128
        %1143 = vxpose.xlu0.b32.cont [14/16] 0.0, 128
        %1144 = vxpose.xlu0.b32.cont [15/16] 0.0, 128
        %1145 = vxpose.xlu0.b32.end [16/16] 0.0, 128
        %v1146 = vpop.trf.xlu0
        %v1147 = vpop.trf.xlu0
        %v1148 = vpop.trf.xlu0
        %v1149 = vpop.trf.xlu0
        %v1150 = vpop.trf.xlu0
        %v1151 = vpop.trf.xlu0
        %v1152 = vpop.trf.xlu0
        %v1153 = vpop.trf.xlu0
        %v1154 = vpop.trf.xlu0
        %v1155 = vpop.trf.xlu0
        %v1156 = vpop.trf.xlu0
        %v1157 = vpop.trf.xlu0
        %v1158 = vpop.trf.xlu0
        %v1159 = vpop.trf.xlu0
        %v1160 = vpop.trf.xlu0
        %v1161 = vpop.trf.xlu0
        %1162 = vxpose.xlu0.b32.start [1/16] %v1115, 128
        %1163 = vxpose.xlu0.b32.cont [2/16] 0.0, 128
        %1164 = vxpose.xlu0.b32.cont [3/16] 0.0, 128
        %1165 = vxpose.xlu0.b32.cont [4/16] 0.0, 128
        %1166 = vxpose.xlu0.b32.cont [5/16] 0.0, 128
        %1167 = vxpose.xlu0.b32.cont [6/16] 0.0, 128
        %1168 = vxpose.xlu0.b32.cont [7/16] 0.0, 128
        %1169 = vxpose.xlu0.b32.cont [8/16] 0.0, 128
        %1170 = vxpose.xlu0.b32.cont [9/16] 0.0, 128
        %1171 = vxpose.xlu0.b32.cont [10/16] 0.0, 128
        %1172 = vxpose.xlu0.b32.cont [11/16] 0.0, 128
        %1173 = vxpose.xlu0.b32.cont [12/16] 0.0, 128
        %1174 = vxpose.xlu0.b32.cont [13/16] 0.0, 128
        %1175 = vxpose.xlu0.b32.cont [14/16] 0.0, 128
        %1176 = vxpose.xlu0.b32.cont [15/16] 0.0, 128
        %1177 = vxpose.xlu0.b32.end [16/16] 0.0, 128
        %v1178 = vpop.trf.xlu0
        %v1179 = vpop.trf.xlu0
        %v1180 = vpop.trf.xlu0
        %v1181 = vpop.trf.xlu0
        %v1182 = vpop.trf.xlu0
        %v1183 = vpop.trf.xlu0
        %v1184 = vpop.trf.xlu0
        %v1185 = vpop.trf.xlu0
        %v1186 = vpop.trf.xlu0
        %v1187 = vpop.trf.xlu0
        %v1188 = vpop.trf.xlu0
        %v1189 = vpop.trf.xlu0
        %v1190 = vpop.trf.xlu0
        %v1191 = vpop.trf.xlu0
        %v1192 = vpop.trf.xlu0
        %v1193 = vpop.trf.xlu0
        %1194 = vxpose.xlu0.b32.start [1/16] %v1116, 128
        %1195 = vxpose.xlu0.b32.cont [2/16] 0.0, 128
        %1196 = vxpose.xlu0.b32.cont [3/16] 0.0, 128
        %1197 = vxpose.xlu0.b32.cont [4/16] 0.0, 128
        %1198 = vxpose.xlu0.b32.cont [5/16] 0.0, 128
        %1199 = vxpose.xlu0.b32.cont [6/16] 0.0, 128
        %1200 = vxpose.xlu0.b32.cont [7/16] 0.0, 128
        %1201 = vxpose.xlu0.b32.cont [8/16] 0.0, 128
        %1202 = vxpose.xlu0.b32.cont [9/16] 0.0, 128
        %1203 = vxpose.xlu0.b32.cont [10/16] 0.0, 128
        %1204 = vxpose.xlu0.b32.cont [11/16] 0.0, 128
        %1205 = vxpose.xlu0.b32.cont [12/16] 0.0, 128
        %1206 = vxpose.xlu0.b32.cont [13/16] 0.0, 128
        %1207 = vxpose.xlu0.b32.cont [14/16] 0.0, 128
        %1208 = vxpose.xlu0.b32.cont [15/16] 0.0, 128
        %1209 = vxpose.xlu0.b32.end [16/16] 0.0, 128
        %v1210 = vpop.trf.xlu0
        %v1211 = vpop.trf.xlu0
        %v1212 = vpop.trf.xlu0
        %v1213 = vpop.trf.xlu0
        %v1214 = vpop.trf.xlu0
        %v1215 = vpop.trf.xlu0
        %v1216 = vpop.trf.xlu0
        %v1217 = vpop.trf.xlu0
        %v1218 = vpop.trf.xlu0
        %v1219 = vpop.trf.xlu0
        %v1220 = vpop.trf.xlu0
        %v1221 = vpop.trf.xlu0
        %v1222 = vpop.trf.xlu0
        %v1223 = vpop.trf.xlu0
        %v1224 = vpop.trf.xlu0
        %v1225 = vpop.trf.xlu0
        %1226 = vxpose.xlu0.b32.start [1/16] %v1117, 128
        %1227 = vxpose.xlu0.b32.cont [2/16] 0.0, 128
        %1228 = vxpose.xlu0.b32.cont [3/16] 0.0, 128
        %1229 = vxpose.xlu0.b32.cont [4/16] 0.0, 128
        %1230 = vxpose.xlu0.b32.cont [5/16] 0.0, 128
        %1231 = vxpose.xlu0.b32.cont [6/16] 0.0, 128
        %1232 = vxpose.xlu0.b32.cont [7/16] 0.0, 128
        %1233 = vxpose.xlu0.b32.cont [8/16] 0.0, 128
        %1234 = vxpose.xlu0.b32.cont [9/16] 0.0, 128
        %1235 = vxpose.xlu0.b32.cont [10/16] 0.0, 128
        %1236 = vxpose.xlu0.b32.cont [11/16] 0.0, 128
        %1237 = vxpose.xlu0.b32.cont [12/16] 0.0, 128
        %1238 = vxpose.xlu0.b32.cont [13/16] 0.0, 128
        %1239 = vxpose.xlu0.b32.cont [14/16] 0.0, 128
        %1240 = vxpose.xlu0.b32.cont [15/16] 0.0, 128
        %1241 = vxpose.xlu0.b32.end [16/16] 0.0, 128
        %v1242 = vpop.trf.xlu0
        %v1243 = vpop.trf.xlu0
        %v1244 = vpop.trf.xlu0
        %v1245 = vpop.trf.xlu0
        %v1246 = vpop.trf.xlu0
        %v1247 = vpop.trf.xlu0
        %v1248 = vpop.trf.xlu0
        %v1249 = vpop.trf.xlu0
        %v1250 = vpop.trf.xlu0
        %v1251 = vpop.trf.xlu0
        %v1252 = vpop.trf.xlu0
        %v1253 = vpop.trf.xlu0
        %v1254 = vpop.trf.xlu0
        %v1255 = vpop.trf.xlu0
        %v1256 = vpop.trf.xlu0
        %v1257 = vpop.trf.xlu0
        %v1258 = vpack.c.bf16 %v927, %v927
        %v1259 = vpack.c.bf16 %v928, %v928
        %v1260 = vpack.c.bf16 %v929, %v929
        %v1261 = vpack.c.bf16 %v930, %v930
        %v1262 = vpack.c.bf16 %v983, %v983
        %v1263 = vpack.c.bf16 %v1015, %v1015
        %v1264 = vpack.c.bf16 %v1047, %v1047
        %v1265 = vpack.c.bf16 %v1079, %v1079
        %vm1266 = vcmask 64512
        %v1268 = vsel %vm1266, %v1258, 0
        %v1271 = vsel %vm1266, %v1262, 0
        %1273 = vmatprep.subr.bf16.mxu0 0
        %1274 = vmatpush1.bf16.xpose.msra.mxu0 %v1271
        %1275 = vmatprep.subr.bf16.mxu0 0
        %1276 = vmatpush1.bf16.xpose.msra.mxu0 0
        %1277 = vmatprep.subr.bf16.mxu0 0
        %1278 = vmatpush1.bf16.xpose.msra.mxu0 0
        %1279 = vmatprep.subr.bf16.mxu0 0
        %1280 = vmatpush1.bf16.xpose.msra.mxu0 0
        %1281 = vmatprep.subr.bf16.mxu0 0
        %1282 = vmatpush1.bf16.xpose.msra.mxu0 0
        %1283 = vmatprep.subr.bf16.mxu0 0
        %1284 = vmatpush1.bf16.xpose.msra.mxu0 0
        %1285 = vmatprep.subr.bf16.mxu0 0
        %1286 = vmatpush1.bf16.xpose.msra.mxu0 0
        %1287 = vmatprep.subr.bf16.mxu0 0
        %1288 = vmatpush1.bf16.xpose.msra.mxu0 0
        %1289 = vmatprep.subr.bf16.mxu0 0
        %1290 = vmatpush1.bf16.xpose.msra.mxu0 0
        %1291 = vmatprep.subr.bf16.mxu0 0
        %1292 = vmatpush1.bf16.xpose.msra.mxu0 0
        %1293 = vmatprep.subr.bf16.mxu0 0
        %1294 = vmatpush1.bf16.xpose.msra.mxu0 0
        %1295 = vmatprep.subr.bf16.mxu0 0
        %1296 = vmatpush1.bf16.xpose.msra.mxu0 0
        %1297 = vmatprep.subr.bf16.mxu0 0
        %1298 = vmatpush1.bf16.xpose.msra.mxu0 0
        %1299 = vmatprep.subr.bf16.mxu0 0
        %1300 = vmatpush1.bf16.xpose.msra.mxu0 0
        %1301 = vmatprep.subr.bf16.mxu0 0
        %1302 = vmatpush1.bf16.xpose.msra.mxu0 0
        %1303 = vmatprep.subr.bf16.mxu0 0
        %1304 = vmatpush1.bf16.xpose.msra.mxu0 0
        %1305 = vmatprep.mubr.bf16.mxu0 0
        %1306 = vmatmul.mubr.bf16.gmra.mrb[0].mxu0 %v1268
        %v1307 = vpop.f32.mrb[0].mxu0
        %v1308 = vadd.f32 0.0, %v1307
        %v1309 = vpop.f32.mrb[0].mxu0
        %v1310 = vpop.f32.mrb[0].mxu0
        %v1311 = vpop.f32.mrb[0].mxu0
        %1312 = vdwg.mxu0
        %v1314 = vsel %vm1266, %v1259, 0
        %v1317 = vsel %vm1266, %v1263, 0
        %1319 = vmatprep.subr.bf16.mxu0 0
        %1320 = vmatpush1.bf16.xpose.msra.mxu0 %v1317
        %1321 = vmatprep.subr.bf16.mxu0 0
        %1322 = vmatpush1.bf16.xpose.msra.mxu0 0
        %1323 = vmatprep.subr.bf16.mxu0 0
        %1324 = vmatpush1.bf16.xpose.msra.mxu0 0
        %1325 = vmatprep.subr.bf16.mxu0 0
        %1326 = vmatpush1.bf16.xpose.msra.mxu0 0
        %1327 = vmatprep.subr.bf16.mxu0 0
        %1328 = vmatpush1.bf16.xpose.msra.mxu0 0
        %1329 = vmatprep.subr.bf16.mxu0 0
        %1330 = vmatpush1.bf16.xpose.msra.mxu0 0
        %1331 = vmatprep.subr.bf16.mxu0 0
        %1332 = vmatpush1.bf16.xpose.msra.mxu0 0
        %1333 = vmatprep.subr.bf16.mxu0 0
        %1334 = vmatpush1.bf16.xpose.msra.mxu0 0
        %1335 = vmatprep.subr.bf16.mxu0 0
        %1336 = vmatpush1.bf16.xpose.msra.mxu0 0
        %1337 = vmatprep.subr.bf16.mxu0 0
        %1338 = vmatpush1.bf16.xpose.msra.mxu0 0
        %1339 = vmatprep.subr.bf16.mxu0 0
        %1340 = vmatpush1.bf16.xpose.msra.mxu0 0
        %1341 = vmatprep.subr.bf16.mxu0 0
        %1342 = vmatpush1.bf16.xpose.msra.mxu0 0
        %1343 = vmatprep.subr.bf16.mxu0 0
        %1344 = vmatpush1.bf16.xpose.msra.mxu0 0
        %1345 = vmatprep.subr.bf16.mxu0 0
        %1346 = vmatpush1.bf16.xpose.msra.mxu0 0
        %1347 = vmatprep.subr.bf16.mxu0 0
        %1348 = vmatpush1.bf16.xpose.msra.mxu0 0
        %1349 = vmatprep.subr.bf16.mxu0 0
        %1350 = vmatpush1.bf16.xpose.msra.mxu0 0
        %1351 = vmatprep.mubr.bf16.mxu0 0
        %1352 = vmatmul.mubr.bf16.gmra.mrb[0].mxu0 %v1314
        %v1353 = vpop.f32.mrb[0].mxu0
        %v1354 = vadd.f32 0.0, %v1353
        %v1355 = vpop.f32.mrb[0].mxu0
        %v1356 = vpop.f32.mrb[0].mxu0
        %v1357 = vpop.f32.mrb[0].mxu0
        %1358 = vdwg.mxu0
        %v1360 = vsel %vm1266, %v1260, 0
        %v1363 = vsel %vm1266, %v1264, 0
        %1365 = vmatprep.subr.bf16.mxu0 0
        %1366 = vmatpush1.bf16.xpose.msra.mxu0 %v1363
        %1367 = vmatprep.subr.bf16.mxu0 0
        %1368 = vmatpush1.bf16.xpose.msra.mxu0 0
        %1369 = vmatprep.subr.bf16.mxu0 0
        %1370 = vmatpush1.bf16.xpose.msra.mxu0 0
        %1371 = vmatprep.subr.bf16.mxu0 0
        %1372 = vmatpush1.bf16.xpose.msra.mxu0 0
        %1373 = vmatprep.subr.bf16.mxu0 0
        %1374 = vmatpush1.bf16.xpose.msra.mxu0 0
        %1375 = vmatprep.subr.bf16.mxu0 0
        %1376 = vmatpush1.bf16.xpose.msra.mxu0 0
        %1377 = vmatprep.subr.bf16.mxu0 0
        %1378 = vmatpush1.bf16.xpose.msra.mxu0 0
        %1379 = vmatprep.subr.bf16.mxu0 0
        %1380 = vmatpush1.bf16.xpose.msra.mxu0 0
        %1381 = vmatprep.subr.bf16.mxu0 0
        %1382 = vmatpush1.bf16.xpose.msra.mxu0 0
        %1383 = vmatprep.subr.bf16.mxu0 0
        %1384 = vmatpush1.bf16.xpose.msra.mxu0 0
        %1385 = vmatprep.subr.bf16.mxu0 0
        %1386 = vmatpush1.bf16.xpose.msra.mxu0 0
        %1387 = vmatprep.subr.bf16.mxu0 0
        %1388 = vmatpush1.bf16.xpose.msra.mxu0 0
        %1389 = vmatprep.subr.bf16.mxu0 0
        %1390 = vmatpush1.bf16.xpose.msra.mxu0 0
        %1391 = vmatprep.subr.bf16.mxu0 0
        %1392 = vmatpush1.bf16.xpose.msra.mxu0 0
        %1393 = vmatprep.subr.bf16.mxu0 0
        %1394 = vmatpush1.bf16.xpose.msra.mxu0 0
        %1395 = vmatprep.subr.bf16.mxu0 0
        %1396 = vmatpush1.bf16.xpose.msra.mxu0 0
        %1397 = vmatprep.mubr.bf16.mxu0 0
        %1398 = vmatmul.mubr.bf16.gmra.mrb[0].mxu0 %v1360
        %v1399 = vpop.f32.mrb[0].mxu0
        %v1400 = vadd.f32 0.0, %v1399
        %v1401 = vpop.f32.mrb[0].mxu0
        %v1402 = vpop.f32.mrb[0].mxu0
        %v1403 = vpop.f32.mrb[0].mxu0
        %1404 = vdwg.mxu0
        %v1406 = vsel %vm1266, %v1261, 0
        %v1409 = vsel %vm1266, %v1265, 0
        %1411 = vmatprep.subr.bf16.mxu0 0
        %1412 = vmatpush1.bf16.xpose.msra.mxu0 %v1409
        %1413 = vmatprep.subr.bf16.mxu0 0
        %1414 = vmatpush1.bf16.xpose.msra.mxu0 0
        %1415 = vmatprep.subr.bf16.mxu0 0
        %1416 = vmatpush1.bf16.xpose.msra.mxu0 0
        %1417 = vmatprep.subr.bf16.mxu0 0
        %1418 = vmatpush1.bf16.xpose.msra.mxu0 0
        %1419 = vmatprep.subr.bf16.mxu0 0
        %1420 = vmatpush1.bf16.xpose.msra.mxu0 0
        %1421 = vmatprep.subr.bf16.mxu0 0
        %1422 = vmatpush1.bf16.xpose.msra.mxu0 0
        %1423 = vmatprep.subr.bf16.mxu0 0
        %1424 = vmatpush1.bf16.xpose.msra.mxu0 0
        %1425 = vmatprep.subr.bf16.mxu0 0
        %1426 = vmatpush1.bf16.xpose.msra.mxu0 0
        %1427 = vmatprep.subr.bf16.mxu0 0
        %1428 = vmatpush1.bf16.xpose.msra.mxu0 0
        %1429 = vmatprep.subr.bf16.mxu0 0
        %1430 = vmatpush1.bf16.xpose.msra.mxu0 0
        %1431 = vmatprep.subr.bf16.mxu0 0
        %1432 = vmatpush1.bf16.xpose.msra.mxu0 0
        %1433 = vmatprep.subr.bf16.mxu0 0
        %1434 = vmatpush1.bf16.xpose.msra.mxu0 0
        %1435 = vmatprep.subr.bf16.mxu0 0
        %1436 = vmatpush1.bf16.xpose.msra.mxu0 0
        %1437 = vmatprep.subr.bf16.mxu0 0
        %1438 = vmatpush1.bf16.xpose.msra.mxu0 0
        %1439 = vmatprep.subr.bf16.mxu0 0
        %1440 = vmatpush1.bf16.xpose.msra.mxu0 0
        %1441 = vmatprep.subr.bf16.mxu0 0
        %1442 = vmatpush1.bf16.xpose.msra.mxu0 0
        %1443 = vmatprep.mubr.bf16.mxu0 0
        %1444 = vmatmul.mubr.bf16.gmra.mrb[0].mxu0 %v1406
        %v1445 = vpop.f32.mrb[0].mxu0
        %v1446 = vadd.f32 0.0, %v1445
        %v1447 = vpop.f32.mrb[0].mxu0
        %v1448 = vpop.f32.mrb[0].mxu0
        %v1449 = vpop.f32.mrb[0].mxu0
        %1450 = vdwg.mxu0
        %v1451 = vsel %vm1266, %v1308, -inf
        %1452 = vmax.xlane.f32.xlu0 %v1451
        %v1453 = vpop.xlane.xlu0 %1452
        %v1454 = vsel %vm1266, %v1354, -inf
        %1455 = vmax.xlane.f32.xlu0 %v1454
        %v1456 = vpop.xlane.xlu0 %1455
        %v1457 = vsel %vm1266, %v1400, -inf
        %1458 = vmax.xlane.f32.xlu0 %v1457
        %v1459 = vpop.xlane.xlu0 %1458
        %v1460 = vsel %vm1266, %v1446, -inf
        %1461 = vmax.xlane.f32.xlu0 %v1460
        %v1462 = vpop.xlane.xlu0 %1461
        %v1463 = vsub.f32 %v1308, %v1453
        %v1464 = vsub.f32 %v1354, %v1456
        %v1465 = vsub.f32 %v1400, %v1459
        %v1466 = vsub.f32 %v1446, %v1462
        %v1467 = vmul.f32 %v1463, 1.442695
        %v1468 = vpow.pop %v1467
        %v1469 = vmul.f32 %v1464, 1.442695
        %v1470 = vpow.pop %v1469
        %v1471 = vmul.f32 %v1465, 1.442695
        %v1472 = vpow.pop %v1471
        %v1473 = vmul.f32 %v1466, 1.442695
        %v1474 = vpow.pop %v1473
        %v1475 = vsel %vm1266, %v1468, 0.0
        %1476 = vadd.xlane.f32.xlu0 %v1475
        %v1477 = vpop.xlane.xlu0 %1476
        %v1478 = vsel %vm1266, %v1470, 0.0
        %1479 = vadd.xlane.f32.xlu0 %v1478
        %v1480 = vpop.xlane.xlu0 %1479
        %v1481 = vsel %vm1266, %v1472, 0.0
        %1482 = vadd.xlane.f32.xlu0 %v1481
        %v1483 = vpop.xlane.xlu0 %1482
        %v1484 = vsel %vm1266, %v1474, 0.0
        %1485 = vadd.xlane.f32.xlu0 %v1484
        %v1486 = vpop.xlane.xlu0 %1485
        %v1487 = vrcp.pop %v1477
        %v1488 = vrcp.pop %v1480
        %v1489 = vrcp.pop %v1483
        %v1490 = vrcp.pop %v1486
        %v1491 = vmul.f32 %v1468, %v1487
        %v1492 = vmul.f32 %v1470, %v1488
        %v1493 = vmul.f32 %v1472, %v1489
        %v1494 = vmul.f32 %v1474, %v1490
        %v1495 = vpack.c.bf16 %v1491, %v1491
        %v1496 = vpack.c.bf16 %v1492, %v1492
        %v1497 = vpack.c.bf16 %v1493, %v1493
        %v1498 = vpack.c.bf16 %v1494, %v1494
        %v1499 = vpack.c.bf16 %v1146, %v1146
        %v1500 = vpack.c.bf16 %v1178, %v1178
        %v1501 = vpack.c.bf16 %v1210, %v1210
        %v1502 = vpack.c.bf16 %v1242, %v1242
        %v1504 = vsel %vm1266, %v1495, 0
        %vm1506 = vcmask 1043456
        %v1508 = vsel %vm1506, %v1499, 0
        %1510 = vmatprep.subr.bf16.mxu0 0
        %1511 = vmatpush1.bf16.msra.mxu0 %v1508
        %1512 = vmatprep.subr.bf16.mxu0 0
        %1513 = vmatpush1.bf16.msra.mxu0 0
        %1514 = vmatprep.subr.bf16.mxu0 0
        %1515 = vmatpush1.bf16.msra.mxu0 0
        %1516 = vmatprep.subr.bf16.mxu0 0
        %1517 = vmatpush1.bf16.msra.mxu0 0
        %1518 = vmatprep.subr.bf16.mxu0 0
        %1519 = vmatpush1.bf16.msra.mxu0 0
        %1520 = vmatprep.subr.bf16.mxu0 0
        %1521 = vmatpush1.bf16.msra.mxu0 0
        %1522 = vmatprep.subr.bf16.mxu0 0
        %1523 = vmatpush1.bf16.msra.mxu0 0
        %1524 = vmatprep.subr.bf16.mxu0 0
        %1525 = vmatpush1.bf16.msra.mxu0 0
        %1526 = vmatprep.subr.bf16.mxu0 0
        %1527 = vmatpush1.bf16.msra.mxu0 0
        %1528 = vmatprep.subr.bf16.mxu0 0
        %1529 = vmatpush1.bf16.msra.mxu0 0
        %1530 = vmatprep.subr.bf16.mxu0 0
        %1531 = vmatpush1.bf16.msra.mxu0 0
        %1532 = vmatprep.subr.bf16.mxu0 0
        %1533 = vmatpush1.bf16.msra.mxu0 0
        %1534 = vmatprep.subr.bf16.mxu0 0
        %1535 = vmatpush1.bf16.msra.mxu0 0
        %1536 = vmatprep.subr.bf16.mxu0 0
        %1537 = vmatpush1.bf16.msra.mxu0 0
        %1538 = vmatprep.subr.bf16.mxu0 0
        %1539 = vmatpush1.bf16.msra.mxu0 0
        %1540 = vmatprep.subr.bf16.mxu0 0
        %1541 = vmatpush1.bf16.msra.mxu0 0
        %1542 = vmatprep.mubr.bf16.mxu0 0
        %1543 = vmatmul.mubr.bf16.gmra.mrb[0].mxu0 %v1504
        %v1544 = vpop.f32.mrb[0].mxu0
        %v1545 = vadd.f32 0.0, %v1544
        %v1546 = vpop.f32.mrb[0].mxu0
        %v1547 = vpop.f32.mrb[0].mxu0
        %v1548 = vpop.f32.mrb[0].mxu0
        %1549 = vdwg.mxu0
        %v1551 = vsel %vm1266, %v1496, 0
        %v1554 = vsel %vm1506, %v1500, 0
        %1556 = vmatprep.subr.bf16.mxu0 0
        %1557 = vmatpush1.bf16.msra.mxu0 %v1554
        %1558 = vmatprep.subr.bf16.mxu0 0
        %1559 = vmatpush1.bf16.msra.mxu0 0
        %1560 = vmatprep.subr.bf16.mxu0 0
        %1561 = vmatpush1.bf16.msra.mxu0 0
        %1562 = vmatprep.subr.bf16.mxu0 0
        %1563 = vmatpush1.bf16.msra.mxu0 0
        %1564 = vmatprep.subr.bf16.mxu0 0
        %1565 = vmatpush1.bf16.msra.mxu0 0
        %1566 = vmatprep.subr.bf16.mxu0 0
        %1567 = vmatpush1.bf16.msra.mxu0 0
        %1568 = vmatprep.subr.bf16.mxu0 0
        %1569 = vmatpush1.bf16.msra.mxu0 0
        %1570 = vmatprep.subr.bf16.mxu0 0
        %1571 = vmatpush1.bf16.msra.mxu0 0
        %1572 = vmatprep.subr.bf16.mxu0 0
        %1573 = vmatpush1.bf16.msra.mxu0 0
        %1574 = vmatprep.subr.bf16.mxu0 0
        %1575 = vmatpush1.bf16.msra.mxu0 0
        %1576 = vmatprep.subr.bf16.mxu0 0
        %1577 = vmatpush1.bf16.msra.mxu0 0
        %1578 = vmatprep.subr.bf16.mxu0 0
        %1579 = vmatpush1.bf16.msra.mxu0 0
        %1580 = vmatprep.subr.bf16.mxu0 0
        %1581 = vmatpush1.bf16.msra.mxu0 0
        %1582 = vmatprep.subr.bf16.mxu0 0
        %1583 = vmatpush1.bf16.msra.mxu0 0
        %1584 = vmatprep.subr.bf16.mxu0 0
        %1585 = vmatpush1.bf16.msra.mxu0 0
        %1586 = vmatprep.subr.bf16.mxu0 0
        %1587 = vmatpush1.bf16.msra.mxu0 0
        %1588 = vmatprep.mubr.bf16.mxu0 0
        %1589 = vmatmul.mubr.bf16.gmra.mrb[0].mxu0 %v1551
        %v1590 = vpop.f32.mrb[0].mxu0
        %v1591 = vadd.f32 0.0, %v1590
        %v1592 = vpop.f32.mrb[0].mxu0
        %v1593 = vpop.f32.mrb[0].mxu0
        %v1594 = vpop.f32.mrb[0].mxu0
        %1595 = vdwg.mxu0
        %v1597 = vsel %vm1266, %v1497, 0
        %v1600 = vsel %vm1506, %v1501, 0
        %1602 = vmatprep.subr.bf16.mxu0 0
        %1603 = vmatpush1.bf16.msra.mxu0 %v1600
        %1604 = vmatprep.subr.bf16.mxu0 0
        %1605 = vmatpush1.bf16.msra.mxu0 0
        %1606 = vmatprep.subr.bf16.mxu0 0
        %1607 = vmatpush1.bf16.msra.mxu0 0
        %1608 = vmatprep.subr.bf16.mxu0 0
        %1609 = vmatpush1.bf16.msra.mxu0 0
        %1610 = vmatprep.subr.bf16.mxu0 0
        %1611 = vmatpush1.bf16.msra.mxu0 0
        %1612 = vmatprep.subr.bf16.mxu0 0
        %1613 = vmatpush1.bf16.msra.mxu0 0
        %1614 = vmatprep.subr.bf16.mxu0 0
        %1615 = vmatpush1.bf16.msra.mxu0 0
        %1616 = vmatprep.subr.bf16.mxu0 0
        %1617 = vmatpush1.bf16.msra.mxu0 0
        %1618 = vmatprep.subr.bf16.mxu0 0
        %1619 = vmatpush1.bf16.msra.mxu0 0
        %1620 = vmatprep.subr.bf16.mxu0 0
        %1621 = vmatpush1.bf16.msra.mxu0 0
        %1622 = vmatprep.subr.bf16.mxu0 0
        %1623 = vmatpush1.bf16.msra.mxu0 0
        %1624 = vmatprep.subr.bf16.mxu0 0
        %1625 = vmatpush1.bf16.msra.mxu0 0
        %1626 = vmatprep.subr.bf16.mxu0 0
        %1627 = vmatpush1.bf16.msra.mxu0 0
        %1628 = vmatprep.subr.bf16.mxu0 0
        %1629 = vmatpush1.bf16.msra.mxu0 0
        %1630 = vmatprep.subr.bf16.mxu0 0
        %1631 = vmatpush1.bf16.msra.mxu0 0
        %1632 = vmatprep.subr.bf16.mxu0 0
        %1633 = vmatpush1.bf16.msra.mxu0 0
        %1634 = vmatprep.mubr.bf16.mxu0 0
        %1635 = vmatmul.mubr.bf16.gmra.mrb[0].mxu0 %v1597
        %v1636 = vpop.f32.mrb[0].mxu0
        %v1637 = vadd.f32 0.0, %v1636
        %v1638 = vpop.f32.mrb[0].mxu0
        %v1639 = vpop.f32.mrb[0].mxu0
        %v1640 = vpop.f32.mrb[0].mxu0
        %1641 = vdwg.mxu0
        %v1643 = vsel %vm1266, %v1498, 0
        %v1646 = vsel %vm1506, %v1502, 0
        %1648 = vmatprep.subr.bf16.mxu0 0
        %1649 = vmatpush1.bf16.msra.mxu0 %v1646
        %1650 = vmatprep.subr.bf16.mxu0 0
        %1651 = vmatpush1.bf16.msra.mxu0 0
        %1652 = vmatprep.subr.bf16.mxu0 0
        %1653 = vmatpush1.bf16.msra.mxu0 0
        %1654 = vmatprep.subr.bf16.mxu0 0
        %1655 = vmatpush1.bf16.msra.mxu0 0
        %1656 = vmatprep.subr.bf16.mxu0 0
        %1657 = vmatpush1.bf16.msra.mxu0 0
        %1658 = vmatprep.subr.bf16.mxu0 0
        %1659 = vmatpush1.bf16.msra.mxu0 0
        %1660 = vmatprep.subr.bf16.mxu0 0
        %1661 = vmatpush1.bf16.msra.mxu0 0
        %1662 = vmatprep.subr.bf16.mxu0 0
        %1663 = vmatpush1.bf16.msra.mxu0 0
        %1664 = vmatprep.subr.bf16.mxu0 0
        %1665 = vmatpush1.bf16.msra.mxu0 0
        %1666 = vmatprep.subr.bf16.mxu0 0
        %1667 = vmatpush1.bf16.msra.mxu0 0
        %1668 = vmatprep.subr.bf16.mxu0 0
        %1669 = vmatpush1.bf16.msra.mxu0 0
        %1670 = vmatprep.subr.bf16.mxu0 0
        %1671 = vmatpush1.bf16.msra.mxu0 0
        %1672 = vmatprep.subr.bf16.mxu0 0
        %1673 = vmatpush1.bf16.msra.mxu0 0
        %1674 = vmatprep.subr.bf16.mxu0 0
        %1675 = vmatpush1.bf16.msra.mxu0 0
        %1676 = vmatprep.subr.bf16.mxu0 0
        %1677 = vmatpush1.bf16.msra.mxu0 0
        %1678 = vmatprep.subr.bf16.mxu0 0
        %1679 = vmatpush1.bf16.msra.mxu0 0
        %1680 = vmatprep.mubr.bf16.mxu0 0
        %1681 = vmatmul.mubr.bf16.gmra.mrb[0].mxu0 %v1643
        %v1682 = vpop.f32.mrb[0].mxu0
        %v1683 = vadd.f32 0.0, %v1682
        %v1684 = vpop.f32.mrb[0].mxu0
        %v1685 = vpop.f32.mrb[0].mxu0
        %v1686 = vpop.f32.mrb[0].mxu0
        %1687 = vdwg.mxu0
        %v1688 = vpack.c.bf16 %v1545, %v1545
        %v1689 = vpack.c.bf16 %v1591, %v1591
        %v1690 = vpack.c.bf16 %v1637, %v1637
        %v1691 = vpack.c.bf16 %v1683, %v1683
        %v1692 = vld [vmem:[%s634] sm:$0xf]
        %v1693 = vld [vmem:[%s634 + $0x4] sm:$0xf]
        %v1694 = vld [vmem:[%s634 + $0x8] sm:$0xf]
        %v1695 = vld [vmem:[%s634 + $0xc] sm:$0xf]
        %v1697 = vsel %vm1266, %v1688, 0
        %v1700 = vsel %vm1506, %v1692, 0
        %1702 = vmatprep.subr.bf16.mxu0 0
        %1703 = vmatpush1.bf16.msra.mxu0 %v1700
        %1704 = vmatprep.subr.bf16.mxu0 0
        %1705 = vmatpush1.bf16.msra.mxu0 0
        %1706 = vmatprep.subr.bf16.mxu0 0
        %1707 = vmatpush1.bf16.msra.mxu0 0
        %1708 = vmatprep.subr.bf16.mxu0 0
        %1709 = vmatpush1.bf16.msra.mxu0 0
        %1710 = vmatprep.subr.bf16.mxu0 0
        %1711 = vmatpush1.bf16.msra.mxu0 0
        %1712 = vmatprep.subr.bf16.mxu0 0
        %1713 = vmatpush1.bf16.msra.mxu0 0
        %1714 = vmatprep.subr.bf16.mxu0 0
        %1715 = vmatpush1.bf16.msra.mxu0 0
        %1716 = vmatprep.subr.bf16.mxu0 0
        %1717 = vmatpush1.bf16.msra.mxu0 0
        %1718 = vmatprep.subr.bf16.mxu0 0
        %1719 = vmatpush1.bf16.msra.mxu0 0
        %1720 = vmatprep.subr.bf16.mxu0 0
        %1721 = vmatpush1.bf16.msra.mxu0 0
        %1722 = vmatprep.subr.bf16.mxu0 0
        %1723 = vmatpush1.bf16.msra.mxu0 0
        %1724 = vmatprep.subr.bf16.mxu0 0
        %1725 = vmatpush1.bf16.msra.mxu0 0
        %1726 = vmatprep.subr.bf16.mxu0 0
        %1727 = vmatpush1.bf16.msra.mxu0 0
        %1728 = vmatprep.subr.bf16.mxu0 0
        %1729 = vmatpush1.bf16.msra.mxu0 0
        %1730 = vmatprep.subr.bf16.mxu0 0
        %1731 = vmatpush1.bf16.msra.mxu0 0
        %1732 = vmatprep.subr.bf16.mxu0 0
        %1733 = vmatpush1.bf16.msra.mxu0 0
        %1734 = vmatprep.mubr.bf16.mxu0 0
        %1735 = vmatmul.mubr.bf16.gmra.mrb[0].mxu0 %v1697
        %v1736 = vpop.f32.mrb[0].mxu0
        %v1737 = vadd.f32 0.0, %v1736
        %v1738 = vpop.f32.mrb[0].mxu0
        %v1739 = vpop.f32.mrb[0].mxu0
        %v1740 = vpop.f32.mrb[0].mxu0
        %1741 = vdwg.mxu0
        %v1743 = vsel %vm1266, %v1689, 0
        %v1746 = vsel %vm1506, %v1693, 0
        %1748 = vmatprep.subr.bf16.mxu0 0
        %1749 = vmatpush1.bf16.msra.mxu0 %v1746
        %1750 = vmatprep.subr.bf16.mxu0 0
        %1751 = vmatpush1.bf16.msra.mxu0 0
        %1752 = vmatprep.subr.bf16.mxu0 0
        %1753 = vmatpush1.bf16.msra.mxu0 0
        %1754 = vmatprep.subr.bf16.mxu0 0
        %1755 = vmatpush1.bf16.msra.mxu0 0
        %1756 = vmatprep.subr.bf16.mxu0 0
        %1757 = vmatpush1.bf16.msra.mxu0 0
        %1758 = vmatprep.subr.bf16.mxu0 0
        %1759 = vmatpush1.bf16.msra.mxu0 0
        %1760 = vmatprep.subr.bf16.mxu0 0
        %1761 = vmatpush1.bf16.msra.mxu0 0
        %1762 = vmatprep.subr.bf16.mxu0 0
        %1763 = vmatpush1.bf16.msra.mxu0 0
        %1764 = vmatprep.subr.bf16.mxu0 0
        %1765 = vmatpush1.bf16.msra.mxu0 0
        %1766 = vmatprep.subr.bf16.mxu0 0
        %1767 = vmatpush1.bf16.msra.mxu0 0
        %1768 = vmatprep.subr.bf16.mxu0 0
        %1769 = vmatpush1.bf16.msra.mxu0 0
        %1770 = vmatprep.subr.bf16.mxu0 0
        %1771 = vmatpush1.bf16.msra.mxu0 0
        %1772 = vmatprep.subr.bf16.mxu0 0
        %1773 = vmatpush1.bf16.msra.mxu0 0
        %1774 = vmatprep.subr.bf16.mxu0 0
        %1775 = vmatpush1.bf16.msra.mxu0 0
        %1776 = vmatprep.subr.bf16.mxu0 0
        %1777 = vmatpush1.bf16.msra.mxu0 0
        %1778 = vmatprep.subr.bf16.mxu0 0
        %1779 = vmatpush1.bf16.msra.mxu0 0
        %1780 = vmatprep.mubr.bf16.mxu0 0
        %1781 = vmatmul.mubr.bf16.gmra.mrb[0].mxu0 %v1743
        %v1782 = vpop.f32.mrb[0].mxu0
        %v1783 = vadd.f32 0.0, %v1782
        %v1784 = vpop.f32.mrb[0].mxu0
        %v1785 = vpop.f32.mrb[0].mxu0
        %v1786 = vpop.f32.mrb[0].mxu0
        %1787 = vdwg.mxu0
        %v1789 = vsel %vm1266, %v1690, 0
        %v1792 = vsel %vm1506, %v1694, 0
        %1794 = vmatprep.subr.bf16.mxu0 0
        %1795 = vmatpush1.bf16.msra.mxu0 %v1792
        %1796 = vmatprep.subr.bf16.mxu0 0
        %1797 = vmatpush1.bf16.msra.mxu0 0
        %1798 = vmatprep.subr.bf16.mxu0 0
        %1799 = vmatpush1.bf16.msra.mxu0 0
        %1800 = vmatprep.subr.bf16.mxu0 0
        %1801 = vmatpush1.bf16.msra.mxu0 0
        %1802 = vmatprep.subr.bf16.mxu0 0
        %1803 = vmatpush1.bf16.msra.mxu0 0
        %1804 = vmatprep.subr.bf16.mxu0 0
        %1805 = vmatpush1.bf16.msra.mxu0 0
        %1806 = vmatprep.subr.bf16.mxu0 0
        %1807 = vmatpush1.bf16.msra.mxu0 0
        %1808 = vmatprep.subr.bf16.mxu0 0
        %1809 = vmatpush1.bf16.msra.mxu0 0
        %1810 = vmatprep.subr.bf16.mxu0 0
        %1811 = vmatpush1.bf16.msra.mxu0 0
        %1812 = vmatprep.subr.bf16.mxu0 0
        %1813 = vmatpush1.bf16.msra.mxu0 0
        %1814 = vmatprep.subr.bf16.mxu0 0
        %1815 = vmatpush1.bf16.msra.mxu0 0
        %1816 = vmatprep.subr.bf16.mxu0 0
        %1817 = vmatpush1.bf16.msra.mxu0 0
        %1818 = vmatprep.subr.bf16.mxu0 0
        %1819 = vmatpush1.bf16.msra.mxu0 0
        %1820 = vmatprep.subr.bf16.mxu0 0
        %1821 = vmatpush1.bf16.msra.mxu0 0
        %1822 = vmatprep.subr.bf16.mxu0 0
        %1823 = vmatpush1.bf16.msra.mxu0 0
        %1824 = vmatprep.subr.bf16.mxu0 0
        %1825 = vmatpush1.bf16.msra.mxu0 0
        %1826 = vmatprep.mubr.bf16.mxu0 0
        %1827 = vmatmul.mubr.bf16.gmra.mrb[0].mxu0 %v1789
        %v1828 = vpop.f32.mrb[0].mxu0
        %v1829 = vadd.f32 0.0, %v1828
        %v1830 = vpop.f32.mrb[0].mxu0
        %v1831 = vpop.f32.mrb[0].mxu0
        %v1832 = vpop.f32.mrb[0].mxu0
        %1833 = vdwg.mxu0
        %v1835 = vsel %vm1266, %v1691, 0
        %v1838 = vsel %vm1506, %v1695, 0
        %1840 = vmatprep.subr.bf16.mxu0 0
        %1841 = vmatpush1.bf16.msra.mxu0 %v1838
        %1842 = vmatprep.subr.bf16.mxu0 0
        %1843 = vmatpush1.bf16.msra.mxu0 0
        %1844 = vmatprep.subr.bf16.mxu0 0
        %1845 = vmatpush1.bf16.msra.mxu0 0
        %1846 = vmatprep.subr.bf16.mxu0 0
        %1847 = vmatpush1.bf16.msra.mxu0 0
        %1848 = vmatprep.subr.bf16.mxu0 0
        %1849 = vmatpush1.bf16.msra.mxu0 0
        %1850 = vmatprep.subr.bf16.mxu0 0
        %1851 = vmatpush1.bf16.msra.mxu0 0
        %1852 = vmatprep.subr.bf16.mxu0 0
        %1853 = vmatpush1.bf16.msra.mxu0 0
        %1854 = vmatprep.subr.bf16.mxu0 0
        %1855 = vmatpush1.bf16.msra.mxu0 0
        %1856 = vmatprep.subr.bf16.mxu0 0
        %1857 = vmatpush1.bf16.msra.mxu0 0
        %1858 = vmatprep.subr.bf16.mxu0 0
        %1859 = vmatpush1.bf16.msra.mxu0 0
        %1860 = vmatprep.subr.bf16.mxu0 0
        %1861 = vmatpush1.bf16.msra.mxu0 0
        %1862 = vmatprep.subr.bf16.mxu0 0
        %1863 = vmatpush1.bf16.msra.mxu0 0
        %1864 = vmatprep.subr.bf16.mxu0 0
        %1865 = vmatpush1.bf16.msra.mxu0 0
        %1866 = vmatprep.subr.bf16.mxu0 0
        %1867 = vmatpush1.bf16.msra.mxu0 0
        %1868 = vmatprep.subr.bf16.mxu0 0
        %1869 = vmatpush1.bf16.msra.mxu0 0
        %1870 = vmatprep.subr.bf16.mxu0 0
        %1871 = vmatpush1.bf16.msra.mxu0 0
        %1872 = vmatprep.mubr.bf16.mxu0 0
        %1873 = vmatmul.mubr.bf16.gmra.mrb[0].mxu0 %v1835
        %v1874 = vpop.f32.mrb[0].mxu0
        %v1875 = vadd.f32 0.0, %v1874
        %v1876 = vpop.f32.mrb[0].mxu0
        %v1877 = vpop.f32.mrb[0].mxu0
        %v1878 = vpop.f32.mrb[0].mxu0
        %1879 = vdwg.mxu0
        %v1880 = vsel %vm671, %v1737, 0.0
        %v1881 = vsel %vm671, %v1783, 0.0
        %v1882 = vadd.f32 %v1880, %v1881
        %v1883 = vsel %vm671, %v1829, 0.0
        %v1884 = vadd.f32 %v1882, %v1883
        %v1885 = vsel %vm671, %v1875, 0.0
        %v1886 = vadd.f32 %v1884, %v1885
        %v1887 = vld [vmem:[%s637] sm:$0x1]
        %v1889 = vlaneseq
        %v1890 = vshrl.u32 %v1889, 7
        %v1891 = vsub.s32 0, %v1890
        %v1892 = vrot.slane %v1887, %v1891
        %v1894 = vadd.f32 %v1886, %v1892
        %v1895 = vadd.f32 %v668, %v1894
        %v1896 = vld [vmem:[%s640] sm:$0x1]
        %v1897 = vld [vmem:[%s643] sm:$0x1]
        %v1898 = vsel %vm671, %v1895, 0.0
        %1899 = vadd.xlane.f32.xlu0 %v1898
        %v1900 = vpop.xlane.xlu0 %1899
        %v1901 = vmul.f32 %v1900, %v675
        %v1902 = vsub.f32 %v1895, %v1901
        %v1903 = vmul.f32 %v1902, %v1902
        %v1904 = vsel %vm671, %v1903, 0.0
        %1905 = vadd.xlane.f32.xlu0 %v1904
        %v1906 = vpop.xlane.xlu0 %1905
        %v1907 = vmul.f32 %v1906, %v675
        %v1908 = vadd.f32 %v1907, 1e-05
        %v1909 = vrsqrt.pop %v1908
        %v1910 = vmul.f32 %v1902, %v1909
        %v1912 = vlaneseq
        %v1913 = vshrl.u32 %v1912, 7
        %v1914 = vsub.s32 0, %v1913
        %v1915 = vrot.slane %v1896, %v1914
        %v1917 = vmul.f32 %v1910, %v1915
        %v1919 = vlaneseq
        %v1920 = vshrl.u32 %v1919, 7
        %v1921 = vsub.s32 0, %v1920
        %v1922 = vrot.slane %v1897, %v1921
        %v1924 = vadd.f32 %v1917, %v1922
        %v1925 = vpack.c.bf16 %v1924, %v1924
        %v1926 = vld [vmem:[%s648] sm:$0xf]
        %v1927 = vld [vmem:[%s648 + $0x4] sm:$0xf]
        %v1928 = vld [vmem:[%s648 + $0x8] sm:$0xf]
        %v1929 = vld [vmem:[%s648 + $0xc] sm:$0xf]
        %v1930 = vld [vmem:[%s651] sm:$0x1]
        %v1932 = vlaneseq
        %v1933 = vshrl.u32 %v1932, 7
        %v1934 = vsub.s32 0, %v1933
        %v1935 = vrot.slane %v1930, %v1934
        %v1941 = vunpack.c.l.b16 %v1926
        %v1942 = vunpack.c.l.b16 %v1927
        %v1943 = vunpack.c.l.b16 %v1928
        %v1944 = vunpack.c.l.b16 %v1929
        %v1945 = vpack.c.b16 %v1942, %v1941
        %v1946 = vpack.c.b16 %v1944, %v1943
        %v1950 = vsel %vm671, %v1925, 0
        %1952 = vmatprep.subr.bf16.mxu0 0
        %1953 = vmatpush1.bf16.msra.mxu0 %v1945
        %1954 = vmatprep.subr.bf16.mxu0 0
        %1955 = vmatpush1.bf16.msra.mxu0 %v1946
        %1956 = vmatprep.subr.bf16.mxu0 0
        %1957 = vmatpush1.bf16.msra.mxu0 0
        %1958 = vmatprep.subr.bf16.mxu0 0
        %1959 = vmatpush1.bf16.msra.mxu0 0
        %1960 = vmatprep.subr.bf16.mxu0 0
        %1961 = vmatpush1.bf16.msra.mxu0 0
        %1962 = vmatprep.subr.bf16.mxu0 0
        %1963 = vmatpush1.bf16.msra.mxu0 0
        %1964 = vmatprep.subr.bf16.mxu0 0
        %1965 = vmatpush1.bf16.msra.mxu0 0
        %1966 = vmatprep.subr.bf16.mxu0 0
        %1967 = vmatpush1.bf16.msra.mxu0 0
        %1968 = vmatprep.subr.bf16.mxu0 0
        %1969 = vmatpush1.bf16.msra.mxu0 0
        %1970 = vmatprep.subr.bf16.mxu0 0
        %1971 = vmatpush1.bf16.msra.mxu0 0
        %1972 = vmatprep.subr.bf16.mxu0 0
        %1973 = vmatpush1.bf16.msra.mxu0 0
        %1974 = vmatprep.subr.bf16.mxu0 0
        %1975 = vmatpush1.bf16.msra.mxu0 0
        %1976 = vmatprep.subr.bf16.mxu0 0
        %1977 = vmatpush1.bf16.msra.mxu0 0
        %1978 = vmatprep.subr.bf16.mxu0 0
        %1979 = vmatpush1.bf16.msra.mxu0 0
        %1980 = vmatprep.subr.bf16.mxu0 0
        %1981 = vmatpush1.bf16.msra.mxu0 0
        %1982 = vmatprep.subr.bf16.mxu0 0
        %1983 = vmatpush1.bf16.msra.mxu0 0
        %1984 = vmatprep.mubr.bf16.mxu0 0
        %1985 = vmatmul.mubr.bf16.gmra.mrb[0].mxu0 %v1950
        %v1986 = vpop.f32.mrb[0].mxu0
        %v1987 = vadd.f32 %v1935, %v1986
        %v1988 = vpop.f32.mrb[0].mxu0
        %v1989 = vpop.f32.mrb[0].mxu0
        %v1990 = vpop.f32.mrb[0].mxu0
        %1991 = vdwg.mxu0
        %v1992 = vmul.f32 %v1987, 0.5
        %v1993 = vmul.f32 %v1987, 0.70710677
        %v1994 = vand.u32 2147483647, %v1993
        %v1995 = vmul.f32 %v1994, 0.3275911
        %v1996 = vadd.f32 %v1995, 1.0
        %v1997 = vrcp.pop %v1996
        %v1998 = vmul.f32 1.0, %v1997
        %v1999 = vmul.f32 %v1998, 1.0614054
        %v2000 = vadd.f32 %v1999, -1.4531521
        %v2001 = vmul.f32 %v2000, %v1998
        %v2002 = vadd.f32 %v2001, 1.4214138
        %v2003 = vmul.f32 %v2002, %v1998
        %v2004 = vadd.f32 %v2003, -0.28449672
        %v2005 = vmul.f32 %v2004, %v1998
        %v2006 = vadd.f32 %v2005, 0.2548296
        %v2007 = vmul.f32 %v2006, %v1998
        %v2008 = vsub.f32 0.0, %v1994
        %v2009 = vmul.f32 %v2008, %v1994
        %v2010 = vmul.f32 %v2009, 1.442695
        %v2011 = vpow.pop %v2010
        %v2012 = vmul.f32 %v2007, %v2011
        %v2013 = vsub.f32 1.0, %v2012
        %vm2014 = vcmp.ge.f32.partialorder %v1993, 0.0
        %v2015 = vsub.f32 0.0, %v2013
        %v2016 = vsel %vm2014, %v2013, %v2015
        %v2017 = vadd.f32 %v2016, 1.0
        %v2018 = vmul.f32 %v1992, %v2017
        %v2019 = vpack.c.bf16 %v2018, %v2018
        %v2020 = vld [vmem:[%s656] sm:$0xf]
        %v2021 = vld [vmem:[%s656 + $0x4] sm:$0xf]
        %v2022 = vld [vmem:[%s656 + $0x8] sm:$0xf]
        %v2023 = vld [vmem:[%s656 + $0xc] sm:$0xf]
        %v2024 = vld [vmem:[%s656 + $0x10] sm:$0xf]
        %v2025 = vld [vmem:[%s656 + $0x14] sm:$0xf]
        %v2026 = vld [vmem:[%s656 + $0x18] sm:$0xf]
        %v2027 = vld [vmem:[%s656 + $0x1c] sm:$0xf]
        %v2028 = vld [vmem:[%s659] sm:$0x1]
        %v2030 = vlaneseq
        %v2031 = vshrl.u32 %v2030, 7
        %v2032 = vsub.s32 0, %v2031
        %v2033 = vrot.slane %v2028, %v2032
        %v2043 = vunpack.c.l.b16 %v2020
        %v2044 = vunpack.c.l.b16 %v2021
        %v2045 = vunpack.c.l.b16 %v2022
        %v2046 = vunpack.c.l.b16 %v2023
        %v2047 = vunpack.c.l.b16 %v2024
        %v2048 = vunpack.c.l.b16 %v2025
        %v2049 = vunpack.c.l.b16 %v2026
        %v2050 = vunpack.c.l.b16 %v2027
        %v2051 = vpack.c.b16 %v2044, %v2043
        %v2052 = vpack.c.b16 %v2046, %v2045
        %v2053 = vpack.c.b16 %v2048, %v2047
        %v2054 = vpack.c.b16 %v2050, %v2049
        %vm2059 = vcmask 523264
        %v2061 = vsel %vm2059, %v2019, 0
        %2063 = vmatprep.subr.bf16.mxu0 0
        %2064 = vmatpush1.bf16.msra.mxu0 %v2051
        %2065 = vmatprep.subr.bf16.mxu0 0
        %2066 = vmatpush1.bf16.msra.mxu0 %v2052
        %2067 = vmatprep.subr.bf16.mxu0 0
        %2068 = vmatpush1.bf16.msra.mxu0 %v2053
        %2069 = vmatprep.subr.bf16.mxu0 0
        %2070 = vmatpush1.bf16.msra.mxu0 %v2054
        %2071 = vmatprep.subr.bf16.mxu0 0
        %2072 = vmatpush1.bf16.msra.mxu0 0
        %2073 = vmatprep.subr.bf16.mxu0 0
        %2074 = vmatpush1.bf16.msra.mxu0 0
        %2075 = vmatprep.subr.bf16.mxu0 0
        %2076 = vmatpush1.bf16.msra.mxu0 0
        %2077 = vmatprep.subr.bf16.mxu0 0
        %2078 = vmatpush1.bf16.msra.mxu0 0
        %2079 = vmatprep.subr.bf16.mxu0 0
        %2080 = vmatpush1.bf16.msra.mxu0 0
        %2081 = vmatprep.subr.bf16.mxu0 0
        %2082 = vmatpush1.bf16.msra.mxu0 0
        %2083 = vmatprep.subr.bf16.mxu0 0
        %2084 = vmatpush1.bf16.msra.mxu0 0
        %2085 = vmatprep.subr.bf16.mxu0 0
        %2086 = vmatpush1.bf16.msra.mxu0 0
        %2087 = vmatprep.subr.bf16.mxu0 0
        %2088 = vmatpush1.bf16.msra.mxu0 0
        %2089 = vmatprep.subr.bf16.mxu0 0
        %2090 = vmatpush1.bf16.msra.mxu0 0
        %2091 = vmatprep.subr.bf16.mxu0 0
        %2092 = vmatpush1.bf16.msra.mxu0 0
        %2093 = vmatprep.subr.bf16.mxu0 0
        %2094 = vmatpush1.bf16.msra.mxu0 0
        %2095 = vmatprep.mubr.bf16.mxu0 0
        %2096 = vmatmul.mubr.bf16.gmra.mrb[0].mxu0 %v2061
        %v2097 = vpop.f32.mrb[0].mxu0
        %v2098 = vadd.f32 %v2033, %v2097
        %v2099 = vpop.f32.mrb[0].mxu0
        %v2100 = vpop.f32.mrb[0].mxu0
        %v2101 = vpop.f32.mrb[0].mxu0
        %2102 = vdwg.mxu0
        %v2103 = vadd.f32 %v1895, %v2098
        %2104 = vst.msk [vmem:[#allocation2] sm:$0xff] %vm671, %v2103
        %p2105 = scmp.eq.s32.totalorder %s35, 1
        // Predicated region
        $region81: #{masked_transformer_forward.1} parent=71 // pred_check
          %p2106 = pneg %p2105
        $region82: #{masked_transformer_forward.1} parent=71 // pred_check_branch
          %2108 = sbr.rel (%p2106) target = $region84
        $region83: #{masked_transformer_forward.1} parent=71 // pred_region
          %2109 = vst.msk [vmem:[%s615] sm:$0xff] %vm671, %v2103
        $region84: #{masked_transformer_forward.1} parent=71 // pred_fallthru
          _
        %s2110 = sand.u32 %s388, 1
        %s2111 = scalar_lea.sflag [#allocation5], %s2110
        %s2112 = sand.u32 %s388, 1
        %s2113 = smul.addr %s2112, 8
        %s2114 = scalar_lea.vmem [#allocation6], %s2113
        // Predicated region
        $region85: #{masked_transformer_forward.1} parent=71 // pred_check
          %p2115 = pneg %p398
        $region86: #{masked_transformer_forward.1} parent=71 // pred_check_branch
          %2117 = sbr.rel (%p2115) target = $region88
        $region87: #{masked_transformer_forward.1} parent=71 // pred_region
          %s2119 = ssub.s32 128, 128
          %2120 = vsyncadd %s2111, %s2119
          %s2121 = smul.addr %s34, 128
          %s2122 = scalar_lea.hbm %s13, %s2121
          %s2124 = sshll.u32 %s2114, 4
          %s2125 = int_to_ptr.vmem [resolvable:$true] %s2124
          %2127 = dma.vmem_to_hbm [thread:$0]  %s2125, 128, %s2122, %s2111
        $region88: #{masked_transformer_forward.1} parent=71 // pred_fallthru
          _
      $region72: #{masked_transformer_forward.1} parent=5 // pred_fallthru
        _
      %p2128 = scmp.le.s32.totalorder 2, %s25
      // Predicated region
      $region89: #{masked_transformer_forward.1} parent=5 // pred_check
        %p2129 = pneg %p2128
      $region90: #{masked_transformer_forward.1} parent=5 // pred_check_branch
        %2131 = sbr.rel (%p2129) target = $region92
      $region91: #{masked_transformer_forward.1} parent=5 // pred_region
        %s2132 = ssub.s32 %s25, 2
        // Predicated region
        $region93: #{masked_transformer_forward.1} parent=91 // pred_check
          %p2133 = pneg %p404
        $region94: #{masked_transformer_forward.1} parent=91 // pred_check_branch
          %2135 = sbr.rel (%p2133) target = $region96
        $region95: #{masked_transformer_forward.1} parent=91 // pred_region
          %s2136 = sand.u32 %s389, 1
          %s2137 = scalar_lea.sflag [#allocation5], %s2136
          %s2138 = sand.u32 %s389, 1
          %s2139 = smul.addr %s2138, 8
          %s2140 = scalar_lea.vmem [#allocation6], %s2139
          %2141 = dma.done %s2137, 128
        $region96: #{masked_transformer_forward.1} parent=91 // pred_fallthru
          _
      $region92: #{masked_transformer_forward.1} parent=5 // pred_fallthru
        _
    $region6: #{masked_transformer_forward.1} parent=1 // loop_footer
      %s29 = sadd.s32 1, %s25
    $region7: #{masked_transformer_forward.1} parent=1 // loop_footer_branch
      %24 = sbr.rel target = $region3
    $region8: #{masked_transformer_forward.1} parent=1 // loop_exit
      _
    %2142 = vsyncpa [#allocation4], 1
    %s2143 = scalar_lea.sflag [#allocation4], 1
    %2144 = vsyncpa %s2143, 1
    %2145 = vsyncpa [#allocation5], 1
    %s2146 = scalar_lea.sflag [#allocation5], 1
    %2147 = vsyncpa %s2146, 1

</llo_original>
